<compile_context>
chip_gen: v6e
topology: v6e:2x2x1
jax: 0.10.0
libtpu: 0.0.40
codegen_flags: <defaults>
</compile_context>

<pallas_src>
import functools
import math

import jax
import jax.numpy as jnp
import numpy as np
from jax.experimental import pallas as pl
from jax.experimental.pallas import tpu as pltpu


def _topic_noun_attn_kernel(
    topic_ref,    # [1, d_topic]            topic embedding (row)
    e_ref,        # [B, L, d_word]          embedded noun tokens (padded to L)
    lens_ref,     # [B, 1, 1] int32         valid tokens per span
    months_ref,   # [B, 1, 1] int32         month index per span
    wqT_ref,      # [d_topic, d_topic]      q.weight transposed
    bq_ref,       # [1, d_topic]            q.bias
    wkw_ref,      # [d_topic, d_word]       word columns of k.weight
    out_ref,      # [B, 1, D]               D = d_noun_hidden
    *,
    month_info_encode: float,
):
    B, L, dw = e_ref.shape
    d_topic = wqT_ref.shape[0]
    d_month = out_ref.shape[2] - dw
    scale = 1.0 / math.sqrt(d_topic)

    e3 = e_ref[...]                                            # [B, L, dw]
    lens = lens_ref[...]                                       # [B, 1, 1] i32
    months = months_ref[...]                                   # [B, 1, 1] i32

    # --- query projection and q-folded key projection (tiny MXU pushes) ---
    q = (jnp.dot(topic_ref[...], wqT_ref[...],
                 preferred_element_type=jnp.float32) + bq_ref[...])   # [1, d_topic]
    w_eff = jnp.dot(q, wkw_ref[...],
                    preferred_element_type=jnp.float32)               # [1, dw]
    w_eff3 = jnp.broadcast_to(w_eff[None, :, :], (B, 1, dw))          # [B, 1, dw]

    # --- scores for all spans in one batched MXU pass: [B, 1, L] ---
    scores = jnp.einsum("bqd,bkd->bqk", w_eff3, e3,
                        preferred_element_type=jnp.float32) * scale

    # --- mask padded tokens / empty spans ---
    tok = jax.lax.broadcasted_iota(jnp.int32, (B, 1, L), 2)
    valid = tok < lens                                         # [B, 1, L]
    scores = jnp.where(valid, scores, jnp.float32(-1e30))

    # --- softmax over the span length (lane axis) ---
    m = jnp.max(scores, axis=-1, keepdims=True)                # [B, 1, 1]
    p = jnp.where(valid, jnp.exp(scores - m), 0.0)             # [B, 1, L]
    denom = jnp.sum(p, axis=-1, keepdims=True)                 # [B, 1, 1]
    inv = jnp.where(denom > 0.0,
                    pl.reciprocal(denom, approx=True), 0.0)    # empty span -> 0
    p = p * inv

    # --- attention-weighted word values: batched MXU, contract over L ---
    out_word = jnp.einsum("bqk,bkd->bqd", p, e3,
                          preferred_element_type=jnp.float32)  # [B, 1, dw]
    out_ref[:, :, :dw] = out_word

    # --- month part: attn sums to 1 over valid tokens, so it is exactly the
    #     one-hot month row (zero for empty spans). Built in-kernel, no concat.
    mon = jax.lax.broadcasted_iota(jnp.int32, (B, 1, d_month), 2)
    nonempty = (lens > 0).astype(jnp.float32)                  # [B, 1, 1]
    out_ref[:, :, dw:] = (
        (mon == months).astype(jnp.float32) * month_info_encode * nonempty)


def topic_noun_attention(topic_emb, noun_ids, span_lens, months, emb_table,
                         wk, bk, wq, bq, d_noun_hidden,
                         month_info_encode=1.0, block_spans=8):
    """topic_emb: [d_topic]; noun_ids: [nv, L] int32 (padded); span_lens: [nv];
    months: [nv]; emb_table: [vocab, d_word];
    wk: [d_topic, d_noun_hidden], bk: [d_topic]; wq/bq: [d_topic,d_topic]/[d_topic].
    Returns [nv, d_noun_hidden] float32.  `bk` is accepted for API parity but is
    mathematically inert (per-span constant shift cancelled by softmax)."""
    nv, L = noun_ids.shape
    d_word = emb_table.shape[1]
    d_topic = wq.shape[0]
    assert d_noun_hidden > d_word

    # Pad the span axis to a multiple of block_spans (padded spans have len 0).
    nv_pad = -(-nv // block_spans) * block_spans
    pad = nv_pad - nv
    if pad:
        noun_ids = jnp.pad(noun_ids, ((0, pad), (0, 0)))
        span_lens = jnp.pad(span_lens, (0, pad))
        months = jnp.pad(months, (0, pad))

    # Glue: embedding gather (padded token ids are masked away in-kernel).
    e = emb_table[noun_ids].astype(jnp.float32)                # [nv_pad, L, d_word]

    topic2d = jnp.asarray(topic_emb, jnp.float32).reshape(1, d_topic)
    wqT = jnp.asarray(wq, jnp.float32).T                       # [d_topic, d_topic]
    bq2 = jnp.asarray(bq, jnp.float32).reshape(1, d_topic)
    wk_word = jnp.asarray(wk, jnp.float32)[:, :d_word]         # [d_topic, d_word]
    lens3 = jnp.asarray(span_lens, jnp.int32).reshape(nv_pad, 1, 1)
    months3 = jnp.asarray(months, jnp.int32).reshape(nv_pad, 1, 1)

    kernel = functools.partial(_topic_noun_attn_kernel,
                               month_info_encode=float(month_info_encode))

    out3 = pl.pallas_call(
        kernel,
        out_shape=jax.ShapeDtypeStruct((nv_pad, 1, d_noun_hidden), jnp.float32),
        grid_spec=pltpu.PrefetchScalarGridSpec(
            num_scalar_prefetch=0,
            grid=(nv_pad // block_spans,),
            in_specs=[
                pl.BlockSpec((1, d_topic), lambda i: (0, 0)),
                pl.BlockSpec((block_spans, L, d_word), lambda i: (i, 0, 0)),
                pl.BlockSpec((block_spans, 1, 1), lambda i: (i, 0, 0)),
                pl.BlockSpec((block_spans, 1, 1), lambda i: (i, 0, 0)),
                pl.BlockSpec((d_topic, d_topic), lambda i: (0, 0)),
                pl.BlockSpec((1, d_topic), lambda i: (0, 0)),
                pl.BlockSpec((d_topic, d_word), lambda i: (0, 0)),
            ],
            out_specs=pl.BlockSpec((block_spans, 1, d_noun_hidden),
                                   lambda i: (i, 0, 0)),
        ),
        compiler_params=pltpu.CompilerParams(
            dimension_semantics=("parallel",)),
    )(topic2d, e, lens3, months3, wqT, bq2, wk_word)

    return out3.reshape(nv_pad, d_noun_hidden)[:nv]


def reference(topic_emb, noun_ids, span_lens, months, emb_table,
              wk, bk, wq, bq, d_noun_hidden, month_info_encode=1.0):
    """NumPy reference mirroring the PyTorch forward (incl. bk / month cols)."""
    emb = np.asarray(emb_table, np.float64)
    wk = np.asarray(wk, np.float64)
    bk = np.asarray(bk, np.float64)
    wq = np.asarray(wq, np.float64)
    bq = np.asarray(bq, np.float64)
    topic = np.asarray(topic_emb, np.float64)
    ids = np.asarray(noun_ids)
    lens = np.asarray(span_lens)
    mon = np.asarray(months)
    nv = ids.shape[0]
    d_word = emb.shape[1]
    d_topic = wq.shape[0]
    out = np.zeros((nv, d_noun_hidden), np.float64)
    for i in range(nv):
        li = int(lens[i])
        if li == 0:
            continue
        noun_part = emb[ids[i, :li]]                            # [li, d_word]
        month_part = np.zeros((li, d_noun_hidden - d_word), np.float64)
        month_part[:, int(mon[i])] = month_info_encode
        value = np.concatenate([noun_part, month_part], axis=1)  # [li, D]
        key_ = value @ wk.T + bk                                 # [li, d_topic]
        query = topic @ wq.T + bq                                # [d_topic]
        scores = key_ @ query / math.sqrt(d_topic)
        scores = scores - scores.max()
        attn = np.exp(scores)
        attn = attn / attn.sum()
        out[i] = attn @ value
    return out.astype(np.float32)


if __name__ == "__main__":
    # Small shapes implied by the module.
    vocab = 64
    d_word = 32
    d_topic = 16
    d_noun_hidden = 48          # 32 word dims + 16 month slots (>= 12 months)
    num_spans = 13              # not a multiple of block_spans -> exercises padding
    L = 4                       # max tokens per span (dense padding)

    key = jax.random.PRNGKey(0)
    (k_emb, k_topic, k_ids, k_len, k_mon, k_wk, k_bk, k_wq, k_bq) = jax.random.split(key, 9)

    emb_table = jax.random.normal(k_emb, (vocab, d_word), jnp.float32)
    topic_emb = jax.random.normal(k_topic, (d_topic,), jnp.float32)
    noun_ids = jax.random.randint(k_ids, (num_spans, L), 0, vocab, jnp.int32)
    span_lens = jax.random.randint(k_len, (num_spans,), 0, L + 1, jnp.int32)
    span_lens = span_lens.at[0].set(L).at[3].set(0)   # full span + empty span cases
    months = jax.random.randint(k_mon, (num_spans,), 0, 12, jnp.int32)

    wk = jax.random.normal(k_wk, (d_topic, d_noun_hidden), jnp.float32) * math.sqrt(
        2.0 / (d_topic + d_noun_hidden))
    bk = jax.random.normal(k_bk, (d_topic,), jnp.float32) * 0.01
    wq = jax.random.normal(k_wq, (d_topic, d_topic), jnp.float32) * math.sqrt(
        2.0 / (2 * d_topic))
    bq = jax.random.normal(k_bq, (d_topic,), jnp.float32) * 0.01

    out = topic_noun_attention(topic_emb, noun_ids, span_lens, months, emb_table,
                               wk, bk, wq, bq, d_noun_hidden)
    out = jax.block_until_ready(out)

    ref = reference(topic_emb, noun_ids, span_lens, months, emb_table,
                    wk, bk, wq, bq, d_noun_hidden)
    # Tolerance loosened slightly (2e-3) to absorb the approx EUP reciprocal
    # (~2^-12 rel err) and f32-vs-f64 accumulation.
    np.testing.assert_allclose(np.asarray(out), ref, rtol=2e-3, atol=2e-3)

    print("KERNEL_OK")
</pallas_src>

<mosaic_0001>
module attributes {stable_mosaic.version = 11 : i64} {
  func.func @_topic_noun_attn_kernel(%arg0: i32, %arg1: memref<1x16xf32, #tpu.memory_space<vmem>>, %arg2: memref<8x4x32xf32, #tpu.memory_space<vmem>>, %arg3: memref<8x1x1xi32, #tpu.memory_space<vmem>>, %arg4: memref<8x1x1xi32, #tpu.memory_space<vmem>>, %arg5: memref<16x16xf32, #tpu.memory_space<vmem>>, %arg6: memref<1x16xf32, #tpu.memory_space<vmem>>, %arg7: memref<16x32xf32, #tpu.memory_space<vmem>>, %arg8: memref<8x1x48xf32, #tpu.memory_space<vmem>>) attributes {dimension_semantics = [#tpu.dimension_semantics<parallel>], iteration_bounds = array<i64: 2>, scalar_prefetch = 0 : i64, scratch_operands = 0 : i64, tpu.core_type = #tpu.core_type<tc>, window_params = [{pipeline_mode = #tpu.pipeline_mode<synchronous>, transform_indices = @transform_0, window_bounds = array<i64: 1, 16>}, {transform_indices = @transform_1, window_bounds = array<i64: 8, 4, 32>}, {transform_indices = @transform_2, window_bounds = array<i64: 8, 1, 1>}, {transform_indices = @transform_3, window_bounds = array<i64: 8, 1, 1>}, {pipeline_mode = #tpu.pipeline_mode<synchronous>, transform_indices = @transform_4, window_bounds = array<i64: 16, 16>}, {pipeline_mode = #tpu.pipeline_mode<synchronous>, transform_indices = @transform_5, window_bounds = array<i64: 1, 16>}, {pipeline_mode = #tpu.pipeline_mode<synchronous>, transform_indices = @transform_6, window_bounds = array<i64: 16, 32>}, {transform_indices = @transform_7, window_bounds = array<i64: 8, 1, 48>}]} {
    %c0 = arith.constant 0 : index
    %c0_0 = arith.constant 0 : index
    %c0_1 = arith.constant 0 : index
    %0 = vector.load %arg2[%c0, %c0_0, %c0_1] : memref<8x4x32xf32, #tpu.memory_space<vmem>>, vector<8x4x32xf32>
    %c0_2 = arith.constant 0 : index
    %c0_3 = arith.constant 0 : index
    %c0_4 = arith.constant 0 : index
    %1 = vector.load %arg3[%c0_2, %c0_3, %c0_4] : memref<8x1x1xi32, #tpu.memory_space<vmem>>, vector<8x1x1xi32>
    %c0_5 = arith.constant 0 : index
    %c0_6 = arith.constant 0 : index
    %c0_7 = arith.constant 0 : index
    %2 = vector.load %arg4[%c0_5, %c0_6, %c0_7] : memref<8x1x1xi32, #tpu.memory_space<vmem>>, vector<8x1x1xi32>
    %c0_8 = arith.constant 0 : index
    %c0_9 = arith.constant 0 : index
    %3 = vector.load %arg1[%c0_8, %c0_9] : memref<1x16xf32, #tpu.memory_space<vmem>>, vector<1x16xf32>
    %c0_10 = arith.constant 0 : index
    %c0_11 = arith.constant 0 : index
    %4 = vector.load %arg5[%c0_10, %c0_11] : memref<16x16xf32, #tpu.memory_space<vmem>>, vector<16x16xf32>
    %cst = arith.constant dense<0.000000e+00> : vector<1x16xf32>
    %5 = tpu.matmul %3, %4, %cst {dimension_numbers = #tpu.dot_dimension_numbers<[1], [0], [0], [1], [0, 0, 1, 1], [], []>} : vector<1x16xf32>, vector<16x16xf32>, vector<1x16xf32> -> vector<1x16xf32>
    %c0_12 = arith.constant 0 : index
    %c0_13 = arith.constant 0 : index
    %6 = vector.load %arg6[%c0_12, %c0_13] : memref<1x16xf32, #tpu.memory_space<vmem>>, vector<1x16xf32>
    %7 = arith.addf %5, %6 : vector<1x16xf32>
    %c0_14 = arith.constant 0 : index
    %c0_15 = arith.constant 0 : index
    %8 = vector.load %arg7[%c0_14, %c0_15] : memref<16x32xf32, #tpu.memory_space<vmem>>, vector<16x32xf32>
    %cst_16 = arith.constant dense<0.000000e+00> : vector<1x32xf32>
    %9 = tpu.matmul %7, %8, %cst_16 {dimension_numbers = #tpu.dot_dimension_numbers<[1], [0], [0], [1], [0, 0, 1, 1], [], []>} : vector<1x16xf32>, vector<16x32xf32>, vector<1x32xf32> -> vector<1x32xf32>
    %10 = vector.shape_cast %9 : vector<1x32xf32> to vector<1x1x32xf32>
    %11 = vector.shape_cast %10 : vector<1x1x32xf32> to vector<1x1x32xf32>
    %12 = vector.broadcast %11 : vector<1x1x32xf32> to vector<8x1x32xf32>
    "tpu.trace_start"() <{level = 10 : i32, message = "bqd,bkd->bqk"}> : () -> ()
    %cst_17 = arith.constant dense<0.000000e+00> : vector<8x1x4xf32>
    %13 = tpu.matmul %12, %0, %cst_17 {dimension_numbers = #tpu.dot_dimension_numbers<[2], [2], [1], [1], [0, 0, 0, 1, 1, 1], [0], [0]>} : vector<8x1x32xf32>, vector<8x4x32xf32>, vector<8x1x4xf32> -> vector<8x1x4xf32>
    "tpu.trace_stop"() : () -> ()
    %cst_18 = arith.constant 2.500000e-01 : f32
    %14 = vector.broadcast %cst_18 : f32 to vector<8x1x4xf32>
    %15 = arith.mulf %13, %14 : vector<8x1x4xf32>
    %16 = tpu.iota {dimensions = array<i32: 2>} : vector<8x1x4xi32>
    %17 = vector.broadcast %1 : vector<8x1x1xi32> to vector<8x1x4xi32>
    %18 = arith.cmpi slt, %16, %17 : vector<8x1x4xi32>
    %cst_19 = arith.constant -1.000000e+30 : f32
    %19 = vector.broadcast %cst_19 : f32 to vector<8x1x4xf32>
    %20 = arith.select %18, %15, %19 : vector<8x1x4xi1>, vector<8x1x4xf32>
    %cst_20 = arith.constant dense<0xFF800000> : vector<8x1xf32>
    %21 = vector.multi_reduction <maximumf>, %20, %cst_20 [2] : vector<8x1x4xf32> to vector<8x1xf32>
    %22 = vector.shape_cast %21 : vector<8x1xf32> to vector<8x1x1xf32>
    %23 = vector.broadcast %22 : vector<8x1x1xf32> to vector<8x1x4xf32>
    %24 = arith.subf %20, %23 : vector<8x1x4xf32>
    %25 = math.exp %24 : vector<8x1x4xf32>
    %cst_21 = arith.constant 0.000000e+00 : f32
    %26 = vector.broadcast %cst_21 : f32 to vector<8x1x4xf32>
    %27 = arith.select %18, %25, %26 : vector<8x1x4xi1>, vector<8x1x4xf32>
    %cst_22 = arith.constant dense<0.000000e+00> : vector<8x1xf32>
    %28 = vector.multi_reduction <add>, %27, %cst_22 [2] : vector<8x1x4xf32> to vector<8x1xf32>
    %29 = vector.shape_cast %28 : vector<8x1xf32> to vector<8x1x1xf32>
    %cst_23 = arith.constant 0.000000e+00 : f32
    %30 = vector.broadcast %cst_23 : f32 to vector<8x1x1xf32>
    %31 = arith.cmpf ogt, %29, %30 : vector<8x1x1xf32>
    %32 = tpu.reciprocal %29 {approx = true} : vector<8x1x1xf32> -> vector<8x1x1xf32>
    %cst_24 = arith.constant 0.000000e+00 : f32
    %33 = vector.broadcast %cst_24 : f32 to vector<8x1x1xf32>
    %34 = arith.select %31, %32, %33 : vector<8x1x1xi1>, vector<8x1x1xf32>
    %35 = vector.broadcast %34 : vector<8x1x1xf32> to vector<8x1x4xf32>
    %36 = arith.mulf %27, %35 : vector<8x1x4xf32>
    "tpu.trace_start"() <{level = 10 : i32, message = "bqk,bkd->bqd"}> : () -> ()
    %cst_25 = arith.constant dense<0.000000e+00> : vector<8x1x32xf32>
    %37 = tpu.matmul %36, %0, %cst_25 {dimension_numbers = #tpu.dot_dimension_numbers<[2], [1], [1], [2], [0, 0, 0, 1, 1, 2], [0], [0]>} : vector<8x1x4xf32>, vector<8x4x32xf32>, vector<8x1x32xf32> -> vector<8x1x32xf32>
    "tpu.trace_stop"() : () -> ()
    %c0_26 = arith.constant 0 : index
    %c0_27 = arith.constant 0 : index
    %c0_28 = arith.constant 0 : index
    %38 = vector.load %arg8[%c0_26, %c0_27, %c0_28] : memref<8x1x48xf32, #tpu.memory_space<vmem>>, vector<8x1x32xf32>
    tpu.vector_store %arg8[%c0_26, %c0_27, %c0_28], %37 {strides = array<i32>} : memref<8x1x48xf32, #tpu.memory_space<vmem>>, vector<8x1x32xf32>,
    %39 = tpu.iota {dimensions = array<i32: 2>} : vector<8x1x16xi32>
    %c0_i32 = arith.constant 0 : i32
    %40 = vector.broadcast %c0_i32 : i32 to vector<8x1x1xi32>
    %41 = arith.cmpi sgt, %1, %40 : vector<8x1x1xi32>
    %42 = arith.extui %41 : vector<8x1x1xi1> to vector<8x1x1xi32>
    %43 = arith.sitofp %42 : vector<8x1x1xi32> to vector<8x1x1xf32>
    %44 = vector.broadcast %2 : vector<8x1x1xi32> to vector<8x1x16xi32>
    %45 = arith.cmpi eq, %39, %44 : vector<8x1x16xi32>
    %46 = arith.extui %45 : vector<8x1x16xi1> to vector<8x1x16xi32>
    %47 = arith.sitofp %46 : vector<8x1x16xi32> to vector<8x1x16xf32>
    %cst_29 = arith.constant 1.000000e+00 : f32
    %48 = vector.broadcast %cst_29 : f32 to vector<8x1x16xf32>
    %49 = arith.mulf %47, %48 : vector<8x1x16xf32>
    %50 = vector.broadcast %43 : vector<8x1x1xf32> to vector<8x1x16xf32>
    %51 = arith.mulf %49, %50 : vector<8x1x16xf32>
    %c0_30 = arith.constant 0 : index
    %c0_31 = arith.constant 0 : index
    %c32 = arith.constant 32 : index
    %52 = vector.load %arg8[%c0_30, %c0_31, %c32] : memref<8x1x48xf32, #tpu.memory_space<vmem>>, vector<8x1x16xf32>
    tpu.vector_store %arg8[%c0_30, %c0_31, %c32], %51 {strides = array<i32>} : memref<8x1x48xf32, #tpu.memory_space<vmem>>, vector<8x1x16xf32>,
    return
  }
  func.func @transform_0(%arg0: i32) -> (i32, i32) {
    %c0_i32 = arith.constant 0 : i32
    %c0_i32_0 = arith.constant 0 : i32
    %c0_i32_1 = arith.constant 0 : i32
    return %c0_i32, %c0_i32_0 : i32, i32
  }
  func.func @transform_1(%arg0: i32) -> (i32, i32, i32) {
    %c0_i32 = arith.constant 0 : i32
    %c0_i32_0 = arith.constant 0 : i32
    %c0_i32_1 = arith.constant 0 : i32
    return %arg0, %c0_i32, %c0_i32_0 : i32, i32, i32
  }
  func.func @transform_2(%arg0: i32) -> (i32, i32, i32) {
    %c0_i32 = arith.constant 0 : i32
    %c0_i32_0 = arith.constant 0 : i32
    %c0_i32_1 = arith.constant 0 : i32
    return %arg0, %c0_i32, %c0_i32_0 : i32, i32, i32
  }
  func.func @transform_3(%arg0: i32) -> (i32, i32, i32) {
    %c0_i32 = arith.constant 0 : i32
    %c0_i32_0 = arith.constant 0 : i32
    %c0_i32_1 = arith.constant 0 : i32
    return %arg0, %c0_i32, %c0_i32_0 : i32, i32, i32
  }
  func.func @transform_4(%arg0: i32) -> (i32, i32) {
    %c0_i32 = arith.constant 0 : i32
    %c0_i32_0 = arith.constant 0 : i32
    %c0_i32_1 = arith.constant 0 : i32
    return %c0_i32, %c0_i32_0 : i32, i32
  }
  func.func @transform_5(%arg0: i32) -> (i32, i32) {
    %c0_i32 = arith.constant 0 : i32
    %c0_i32_0 = arith.constant 0 : i32
    %c0_i32_1 = arith.constant 0 : i32
    return %c0_i32, %c0_i32_0 : i32, i32
  }
  func.func @transform_6(%arg0: i32) -> (i32, i32) {
    %c0_i32 = arith.constant 0 : i32
    %c0_i32_0 = arith.constant 0 : i32
    %c0_i32_1 = arith.constant 0 : i32
    return %c0_i32, %c0_i32_0 : i32, i32
  }
  func.func @transform_7(%arg0: i32) -> (i32, i32, i32) {
    %c0_i32 = arith.constant 0 : i32
    %c0_i32_0 = arith.constant 0 : i32
    %c0_i32_1 = arith.constant 0 : i32
    return %arg0, %c0_i32, %c0_i32_0 : i32, i32, i32
  }
}

</mosaic_0001>

<llo_original>
// kernel: tpu_custom_call.1
$region0: #{tpu_custom_call.1}
  #allocation0 [shape = 'u32[]', space=smem, size = 0x4, offset = 0x4, fixed_abs, tag = 'smem constant byte address 0x4 - core index']
  #allocation1 [shape = 'u32[144,128]{1,0:T(1,128)}', space=vmem, size = 0x12000, scoped, tag = 'internal scratch']
  %s0 = inlined_call_operand.vmem [shape: f32[1,16], index: 0, kind: input, shape index: {}]
  %s1 = inlined_call_operand.hbm [shape: f32[16,4,32], index: 1, kind: input, shape index: {}]
  %s2 = inlined_call_operand.vmem [shape: s32[16,1,1], index: 2, kind: input, shape index: {}]
  %s3 = inlined_call_operand.vmem [shape: s32[16,1,1], index: 3, kind: input, shape index: {}]
  %s4 = inlined_call_operand.vmem [shape: f32[16,16], index: 4, kind: input, shape index: {}]
  %s5 = inlined_call_operand.vmem [shape: f32[1,16], index: 5, kind: input, shape index: {}]
  %s6 = inlined_call_operand.vmem [shape: f32[16,32], index: 6, kind: input, shape index: {}]
  %s7 = inlined_call_operand.hbm [shape: f32[16,1,48], index: 7, kind: output, shape index: {}]
  %s8 = sld [smem:[#allocation0]]
  $region65: #{tpu_custom_call.1} parent=0
    _
  %s10 = ssub.s32 1, %s8
  %s11 = scalar_select 0, %s10, %s8
  $region1: #{tpu_custom_call.1} parent=0
    #allocation2 [shape = 'u8[32768]{0}', space=vmem, size = 0x8000, scoped, tag = 'input window, operand 1']
    #allocation3 [shape = 's32[2]{0}', space=sflag, size = 0x8, scoped, tag = 'scoped memory for tpu_custom_call.1']
    #allocation4 [shape = 's32[2]{0}', space=sflag, size = 0x8, scoped, tag = 'scoped memory for tpu_custom_call.1']
    #allocation5 [shape = 'u8[8192]{0}', space=vmem, size = 0x2000, scoped, tag = 'output window, operand 0']
    %12 = vsyncpa [#allocation3], 0
    %s13 = scalar_lea.sflag [#allocation3], 1
    %14 = vsyncpa %s13, 0
    %15 = vsyncpa [#allocation4], 0
    %s16 = scalar_lea.sflag [#allocation4], 1
    %17 = vsyncpa %s16, 0
    loop: start=0, step=1, limit=4
    $region2: #{tpu_custom_call.1} parent=1 // loop_pre_header
      _
    $region3: #{tpu_custom_call.1} parent=1 // loop_header
      %s19 = sphi 0, %s23
      %p20 = scmp.ge.s32.totalorder %s19, 4
      %s27 = sphi 0, %s27
      %s29 = sphi 0, %s27
      %s30 = sphi 0, %s29
      %s44 = sphi 0, %s30
      %s50 = sphi 0, %s52
      %s53 = sphi 0, %s50
      %s54 = sphi 0, %s53
      %s70 = sphi 0, %s54
      %s76 = sphi 0, %s78
      %s79 = sphi 0, %s76
      %s80 = sphi 0, %s79
      %s96 = sphi 0, %s80
      %s102 = sphi 0, %s104
      %s105 = sphi 0, %s102
      %s106 = sphi 0, %s105
      %s122 = sphi 0, %s106
      %s126 = sphi 0, %s126
      %s128 = sphi 0, %s126
      %s129 = sphi 0, %s128
      %s143 = sphi 0, %s129
      %s147 = sphi 0, %s147
      %s149 = sphi 0, %s147
      %s150 = sphi 0, %s149
      %s164 = sphi 0, %s150
      %s168 = sphi 0, %s168
      %s170 = sphi 0, %s168
      %s171 = sphi 0, %s170
      %s185 = sphi 0, %s171
      %s191 = sphi 0, %s193
      %s194 = sphi 0, %s191
      %s195 = sphi 0, %s194
      %s211 = sphi 0, %s195
    $region4: #{tpu_custom_call.1} parent=1 // loop_header_branch
      %22 = sbr.rel (%p20) target = $region8
    $region5: #{tpu_custom_call.1} parent=1 // loop_body
      %s24 = ssub.s32 %s19, 1
      %s25 = ssub.s32 %s19, 2
      %s26 = sadd.s32 %s19, 1
      %s28 = sadd.s32 %s27, 1
      %p31 = scmp.eq.s32.totalorder %s19, 1
      %p32 = scmp.ne.s32.totalorder %s27, %s29
      %p33 = scmp.eq.s32.totalorder %s19, 0
      %p34 = por %p32, %p33
      %p35 = scmp.ne.s32.totalorder %s27, %s29
      %p36 = scmp.eq.s32.totalorder %s24, 1
      %p37 = por %p35, %p36
      %p38 = scmp.ne.s32.totalorder %s29, %s30
      %p39 = scmp.eq.s32.totalorder %s24, 0
      %p40 = por %p38, %p39
      %p41 = scmp.ne.s32.totalorder %s29, %s30
      %p42 = scmp.eq.s32.totalorder %s25, 1
      %p43 = por %p41, %p42
      %p45 = scmp.ne.s32.totalorder %s30, %s44
      %p46 = scmp.eq.s32.totalorder %s25, 0
      %p47 = por %p45, %p46
      %s48 = ssub.s32 %s19, %s26
      %p49 = scmp.eq.s32.totalorder %s48, 0
      %s51 = sadd.s32 %s50, 1
      %s52 = scalar_select %p49, %s50, %s51
      %p55 = pneg %p49
      %p56 = scmp.eq.s32.totalorder %s19, 1
      %p57 = por %p55, %p56
      %p58 = scmp.ne.s32.totalorder %s50, %s53
      %p59 = scmp.eq.s32.totalorder %s19, 0
      %p60 = por %p58, %p59
      %p61 = scmp.ne.s32.totalorder %s50, %s53
      %p62 = scmp.eq.s32.totalorder %s24, 1
      %p63 = por %p61, %p62
      %p64 = scmp.ne.s32.totalorder %s53, %s54
      %p65 = scmp.eq.s32.totalorder %s24, 0
      %p66 = por %p64, %p65
      %p67 = scmp.ne.s32.totalorder %s53, %s54
      %p68 = scmp.eq.s32.totalorder %s25, 1
      %p69 = por %p67, %p68
      %p71 = scmp.ne.s32.totalorder %s54, %s70
      %p72 = scmp.eq.s32.totalorder %s25, 0
      %p73 = por %p71, %p72
      %s74 = ssub.s32 %s19, %s26
      %p75 = scmp.eq.s32.totalorder %s74, 0
      %s77 = sadd.s32 %s76, 1
      %s78 = scalar_select %p75, %s76, %s77
      %p81 = pneg %p75
      %p82 = scmp.eq.s32.totalorder %s19, 1
      %p83 = por %p81, %p82
      %p84 = scmp.ne.s32.totalorder %s76, %s79
      %p85 = scmp.eq.s32.totalorder %s19, 0
      %p86 = por %p84, %p85
      %p87 = scmp.ne.s32.totalorder %s76, %s79
      %p88 = scmp.eq.s32.totalorder %s24, 1
      %p89 = por %p87, %p88
      %p90 = scmp.ne.s32.totalorder %s79, %s80
      %p91 = scmp.eq.s32.totalorder %s24, 0
      %p92 = por %p90, %p91
      %p93 = scmp.ne.s32.totalorder %s79, %s80
      %p94 = scmp.eq.s32.totalorder %s25, 1
      %p95 = por %p93, %p94
      %p97 = scmp.ne.s32.totalorder %s80, %s96
      %p98 = scmp.eq.s32.totalorder %s25, 0
      %p99 = por %p97, %p98
      %s100 = ssub.s32 %s19, %s26
      %p101 = scmp.eq.s32.totalorder %s100, 0
      %s103 = sadd.s32 %s102, 1
      %s104 = scalar_select %p101, %s102, %s103
      %p107 = pneg %p101
      %p108 = scmp.eq.s32.totalorder %s19, 1
      %p109 = por %p107, %p108
      %p110 = scmp.ne.s32.totalorder %s102, %s105
      %p111 = scmp.eq.s32.totalorder %s19, 0
      %p112 = por %p110, %p111
      %p113 = scmp.ne.s32.totalorder %s102, %s105
      %p114 = scmp.eq.s32.totalorder %s24, 1
      %p115 = por %p113, %p114
      %p116 = scmp.ne.s32.totalorder %s105, %s106
      %p117 = scmp.eq.s32.totalorder %s24, 0
      %p118 = por %p116, %p117
      %p119 = scmp.ne.s32.totalorder %s105, %s106
      %p120 = scmp.eq.s32.totalorder %s25, 1
      %p121 = por %p119, %p120
      %p123 = scmp.ne.s32.totalorder %s106, %s122
      %p124 = scmp.eq.s32.totalorder %s25, 0
      %p125 = por %p123, %p124
      %s127 = sadd.s32 %s126, 1
      %p130 = scmp.eq.s32.totalorder %s19, 1
      %p131 = scmp.ne.s32.totalorder %s126, %s128
      %p132 = scmp.eq.s32.totalorder %s19, 0
      %p133 = por %p131, %p132
      %p134 = scmp.ne.s32.totalorder %s126, %s128
      %p135 = scmp.eq.s32.totalorder %s24, 1
      %p136 = por %p134, %p135
      %p137 = scmp.ne.s32.totalorder %s128, %s129
      %p138 = scmp.eq.s32.totalorder %s24, 0
      %p139 = por %p137, %p138
      %p140 = scmp.ne.s32.totalorder %s128, %s129
      %p141 = scmp.eq.s32.totalorder %s25, 1
      %p142 = por %p140, %p141
      %p144 = scmp.ne.s32.totalorder %s129, %s143
      %p145 = scmp.eq.s32.totalorder %s25, 0
      %p146 = por %p144, %p145
      %s148 = sadd.s32 %s147, 1
      %p151 = scmp.eq.s32.totalorder %s19, 1
      %p152 = scmp.ne.s32.totalorder %s147, %s149
      %p153 = scmp.eq.s32.totalorder %s19, 0
      %p154 = por %p152, %p153
      %p155 = scmp.ne.s32.totalorder %s147, %s149
      %p156 = scmp.eq.s32.totalorder %s24, 1
      %p157 = por %p155, %p156
      %p158 = scmp.ne.s32.totalorder %s149, %s150
      %p159 = scmp.eq.s32.totalorder %s24, 0
      %p160 = por %p158, %p159
      %p161 = scmp.ne.s32.totalorder %s149, %s150
      %p162 = scmp.eq.s32.totalorder %s25, 1
      %p163 = por %p161, %p162
      %p165 = scmp.ne.s32.totalorder %s150, %s164
      %p166 = scmp.eq.s32.totalorder %s25, 0
      %p167 = por %p165, %p166
      %s169 = sadd.s32 %s168, 1
      %p172 = scmp.eq.s32.totalorder %s19, 1
      %p173 = scmp.ne.s32.totalorder %s168, %s170
      %p174 = scmp.eq.s32.totalorder %s19, 0
      %p175 = por %p173, %p174
      %p176 = scmp.ne.s32.totalorder %s168, %s170
      %p177 = scmp.eq.s32.totalorder %s24, 1
      %p178 = por %p176, %p177
      %p179 = scmp.ne.s32.totalorder %s170, %s171
      %p180 = scmp.eq.s32.totalorder %s24, 0
      %p181 = por %p179, %p180
      %p182 = scmp.ne.s32.totalorder %s170, %s171
      %p183 = scmp.eq.s32.totalorder %s25, 1
      %p184 = por %p182, %p183
      %p186 = scmp.ne.s32.totalorder %s171, %s185
      %p187 = scmp.eq.s32.totalorder %s25, 0
      %p188 = por %p186, %p187
      %s189 = ssub.s32 %s19, %s26
      %p190 = scmp.eq.s32.totalorder %s189, 0
      %s192 = sadd.s32 %s191, 1
      %s193 = scalar_select %p190, %s191, %s192
      %p196 = pneg %p190
      %p197 = scmp.eq.s32.totalorder %s19, 1
      %p198 = por %p196, %p197
      %p199 = scmp.ne.s32.totalorder %s191, %s194
      %p200 = scmp.eq.s32.totalorder %s19, 0
      %p201 = por %p199, %p200
      %p202 = scmp.ne.s32.totalorder %s191, %s194
      %p203 = scmp.eq.s32.totalorder %s24, 1
      %p204 = por %p202, %p203
      %p205 = scmp.ne.s32.totalorder %s194, %s195
      %p206 = scmp.eq.s32.totalorder %s24, 0
      %p207 = por %p205, %p206
      %p208 = scmp.ne.s32.totalorder %s194, %s195
      %p209 = scmp.eq.s32.totalorder %s25, 1
      %p210 = por %p208, %p209
      %p212 = scmp.ne.s32.totalorder %s195, %s211
      %p213 = scmp.eq.s32.totalorder %s25, 0
      %p214 = por %p212, %p213
      %p215 = scmp.le.s32.totalorder 1, %s19
      %p216 = scmp.lt.s32.totalorder %s19, 3
      %p217 = pnand %p215, %p216
      %p218 = pneg %p217
      // Predicated region
      $region9: #{tpu_custom_call.1} parent=5 // pred_check
        _
      $region10: #{tpu_custom_call.1} parent=5 // pred_check_branch
        %220 = sbr.rel (%p217) target = $region12
      $region11: #{tpu_custom_call.1} parent=5 // pred_region
        %s221 = ssub.s32 %s19, 1
        // Predicated region
        $region13: #{tpu_custom_call.1} parent=11 // pred_check
          %p222 = pneg %p40
        $region14: #{tpu_custom_call.1} parent=11 // pred_check_branch
          %224 = sbr.rel (%p222) target = $region16
        $region15: #{tpu_custom_call.1} parent=11 // pred_region
          _
        $region16: #{tpu_custom_call.1} parent=11 // pred_fallthru
          _
        // Predicated region
        $region17: #{tpu_custom_call.1} parent=11 // pred_check
          %p225 = pneg %p139
        $region18: #{tpu_custom_call.1} parent=11 // pred_check_branch
          %227 = sbr.rel (%p225) target = $region20
        $region19: #{tpu_custom_call.1} parent=11 // pred_region
          _
        $region20: #{tpu_custom_call.1} parent=11 // pred_fallthru
          _
        // Predicated region
        $region21: #{tpu_custom_call.1} parent=11 // pred_check
          %p228 = pneg %p160
        $region22: #{tpu_custom_call.1} parent=11 // pred_check_branch
          %230 = sbr.rel (%p228) target = $region24
        $region23: #{tpu_custom_call.1} parent=11 // pred_region
          _
        $region24: #{tpu_custom_call.1} parent=11 // pred_fallthru
          _
        // Predicated region
        $region25: #{tpu_custom_call.1} parent=11 // pred_check
          %p231 = pneg %p181
        $region26: #{tpu_custom_call.1} parent=11 // pred_check_branch
          %233 = sbr.rel (%p231) target = $region28
        $region27: #{tpu_custom_call.1} parent=11 // pred_region
          _
        $region28: #{tpu_custom_call.1} parent=11 // pred_fallthru
          _
      $region12: #{tpu_custom_call.1} parent=5 // pred_fallthru
        _
      %p234 = scmp.lt.s32.totalorder %s19, 2
      // Predicated region
      $region29: #{tpu_custom_call.1} parent=5 // pred_check
        %p235 = pneg %p234
      $region30: #{tpu_custom_call.1} parent=5 // pred_check_branch
        %237 = sbr.rel (%p235) target = $region32
      $region31: #{tpu_custom_call.1} parent=5 // pred_region
        // Predicated region
        $region33: #{tpu_custom_call.1} parent=31 // pred_check
          %p238 = pneg %p60
        $region34: #{tpu_custom_call.1} parent=31 // pred_check_branch
          %240 = sbr.rel (%p238) target = $region36
        $region35: #{tpu_custom_call.1} parent=31 // pred_region
          %s241 = sand.u32 %s50, 1
          %s242 = scalar_lea.sflag [#allocation3], %s241
          %s243 = sand.u32 %s50, 1
          %s244 = smul.addr %s243, 32
          %s245 = scalar_lea.vmem [#allocation2], %s244
          %s246 = smul.u32 8, %s19
          %s248 = ssub.s32 512, 512
          %249 = vsyncadd %s242, %s248
          %s250 = smul.addr %s246, 64
          %s251 = scalar_lea.hbm %s1, %s250
          %s252 = sshll.u32 %s245, 4
          %s253 = int_to_ptr.vmem [resolvable:$true] %s252
          %258 = dma.hbm_to_vmem [thread:$0]  %s251, 512, %s253, %s242, 64, 64, 4
        $region36: #{tpu_custom_call.1} parent=31 // pred_fallthru
          _
        // Predicated region
        $region37: #{tpu_custom_call.1} parent=31 // pred_check
          %p259 = pneg %p86
        $region38: #{tpu_custom_call.1} parent=31 // pred_check_branch
          %261 = sbr.rel (%p259) target = $region40
        $region39: #{tpu_custom_call.1} parent=31 // pred_region
          %s262 = smul.u32 8, %s19
          %p263 = scmp.lt.s32.totalorder %s262, 15
          %s264 = scalar_select %p263, %s262, 15
          %s265 = scalar_lea.vmem %s2, %s264
          %s266 = smul.u32 8, %s19
        $region40: #{tpu_custom_call.1} parent=31 // pred_fallthru
          _
        // Predicated region
        $region41: #{tpu_custom_call.1} parent=31 // pred_check
          %p267 = pneg %p112
        $region42: #{tpu_custom_call.1} parent=31 // pred_check_branch
          %269 = sbr.rel (%p267) target = $region44
        $region43: #{tpu_custom_call.1} parent=31 // pred_region
          %s270 = smul.u32 8, %s19
          %p271 = scmp.lt.s32.totalorder %s270, 15
          %s272 = scalar_select %p271, %s270, 15
          %s273 = scalar_lea.vmem %s3, %s272
          %s274 = smul.u32 8, %s19
        $region44: #{tpu_custom_call.1} parent=31 // pred_fallthru
          _
      $region32: #{tpu_custom_call.1} parent=5 // pred_fallthru
        _
      %p275 = scmp.le.s32.totalorder 1, %s19
      %p276 = scmp.lt.s32.totalorder %s19, 3
      %p277 = pnand %p275, %p276
      %p278 = pneg %p277
      // Predicated region
      $region45: #{tpu_custom_call.1} parent=5 // pred_check
        _
      $region46: #{tpu_custom_call.1} parent=5 // pred_check_branch
        %280 = sbr.rel (%p277) target = $region48
      $region47: #{tpu_custom_call.1} parent=5 // pred_region
        %s281 = ssub.s32 %s19, 1
        %s282 = sand.u32 %s53, 1
        %s283 = scalar_lea.sflag [#allocation3], %s282
        %s284 = sand.u32 %s53, 1
        %s285 = smul.addr %s284, 32
        %s286 = scalar_lea.vmem [#allocation2], %s285
        // Predicated region
        $region49: #{tpu_custom_call.1} parent=47 // pred_check
          %p287 = pneg %p66
        $region50: #{tpu_custom_call.1} parent=47 // pred_check_branch
          %289 = sbr.rel (%p287) target = $region52
        $region51: #{tpu_custom_call.1} parent=47 // pred_region
          %290 = dma.done %s283, 512
        $region52: #{tpu_custom_call.1} parent=47 // pred_fallthru
          _
        %p291 = pneg %p40
        %p292 = pneg %p37
        %s293 = sand.u32 %s53, 1
        %s294 = scalar_lea.sflag [#allocation3], %s293
        %s295 = sand.u32 %s53, 1
        %s296 = smul.addr %s295, 32
        %s297 = scalar_lea.vmem [#allocation2], %s296
        %p298 = pneg %p66
        %p299 = pneg %p63
        %s300 = smul.u32 8, %s24
        %p301 = scmp.lt.s32.totalorder %s300, 15
        %s302 = scalar_select %p301, %s300, 15
        %s303 = scalar_lea.vmem %s2, %s302
        %p304 = pneg %p92
        %p305 = pneg %p89
        %s306 = smul.u32 8, %s24
        %p307 = scmp.lt.s32.totalorder %s306, 15
        %s308 = scalar_select %p307, %s306, 15
        %s309 = scalar_lea.vmem %s3, %s308
        %p310 = pneg %p118
        %p311 = pneg %p115
        %p312 = pneg %p139
        %p313 = pneg %p136
        %p314 = pneg %p160
        %p315 = pneg %p157
        %p316 = pneg %p181
        %p317 = pneg %p178
        %p318 = pneg %p207
        %p319 = pneg %p204
        %s320 = sand.u32 %s194, 1
        %s321 = scalar_lea.sflag [#allocation4], %s320
        %s322 = sand.u32 %s194, 1
        %s323 = smul.addr %s322, 8
        %s324 = scalar_lea.vmem [#allocation5], %s323
        %s325 = smul.u32 8, %s24
        %s326 = smul.u32 8, %s24
        %p327 = scmp.lt.s32.totalorder %s326, 15
        %s328 = scalar_select %p327, %s326, 15
        %s329 = scalar_lea.vmem %s2, %s328
        %s330 = smul.u32 8, %s24
        %s331 = smul.u32 8, %s24
        %p332 = scmp.lt.s32.totalorder %s331, 15
        %s333 = scalar_select %p332, %s331, 15
        %s334 = scalar_lea.vmem %s3, %s333
        %s335 = smul.u32 8, %s24
        %s336 = smul.u32 8, %s24
        %v337 = vld [vmem:[%s286] sm:$0xf]
        %v338 = vld [vmem:[%s286 + $0x4] sm:$0xf]
        %v339 = vld [vmem:[%s286 + $0x8] sm:$0xf]
        %v340 = vld [vmem:[%s286 + $0xc] sm:$0xf]
        %v341 = vld [vmem:[%s286 + $0x10] sm:$0xf]
        %v342 = vld [vmem:[%s286 + $0x14] sm:$0xf]
        %v343 = vld [vmem:[%s286 + $0x18] sm:$0xf]
        %v344 = vld [vmem:[%s286 + $0x1c] sm:$0xf]
        %v345 = vld [vmem:[%s329] sm:$0x1]
        %v346 = vld [vmem:[%s329 + $0x1] sm:$0x1]
        %v347 = vld [vmem:[%s329 + $0x2] sm:$0x1]
        %v348 = vld [vmem:[%s329 + $0x3] sm:$0x1]
        %v349 = vld [vmem:[%s329 + $0x4] sm:$0x1]
        %v350 = vld [vmem:[%s329 + $0x5] sm:$0x1]
        %v351 = vld [vmem:[%s329 + $0x6] sm:$0x1]
        %v352 = vld [vmem:[%s329 + $0x7] sm:$0x1]
        %v353 = vld [vmem:[%s334] sm:$0x1]
        %v354 = vld [vmem:[%s334 + $0x1] sm:$0x1]
        %v355 = vld [vmem:[%s334 + $0x2] sm:$0x1]
        %v356 = vld [vmem:[%s334 + $0x3] sm:$0x1]
        %v357 = vld [vmem:[%s334 + $0x4] sm:$0x1]
        %v358 = vld [vmem:[%s334 + $0x5] sm:$0x1]
        %v359 = vld [vmem:[%s334 + $0x6] sm:$0x1]
        %v360 = vld [vmem:[%s334 + $0x7] sm:$0x1]
        %v361 = vld [vmem:[%s0] sm:$0x1]
        %v362 = vld [vmem:[%s4] sm:$0xff]
        %v363 = vld [vmem:[%s4 + $0x8] sm:$0xff]
        %v364 = vld [vmem:[%s5] sm:$0x1]
        %vm365 = vcmask 130048
        %v367 = vsel %vm365, %v361, 0
        %369 = vmatprep.subr.mxu0 0.0
        %370 = vmatpush1.msra.mxu0 0.0
        %371 = vmatprep.subr.mxu0 0.0
        %372 = vmatpush1.msra.mxu0 0.0
        %373 = vmatprep.subr.mxu0 0.0
        %374 = vmatpush1.msra.mxu0 0.0
        %375 = vmatprep.subr.mxu0 0.0
        %376 = vmatpush1.msra.mxu0 0.0
        %377 = vmatprep.subr.mxu0 0.0
        %378 = vmatpush1.msra.mxu0 0.0
        %379 = vmatprep.subr.mxu0 0.0
        %380 = vmatpush1.msra.mxu0 0.0
        %381 = vmatprep.subr.mxu0 0.0
        %382 = vmatpush1.msra.mxu0 0.0
        %383 = vmatprep.subr.mxu0 0.0
        %384 = vmatpush1.msra.mxu0 0.0
        %385 = vmatprep.subr.mxu0 0.0
        %386 = vmatpush1.msra.mxu0 0.0
        %387 = vmatprep.subr.mxu0 0.0
        %388 = vmatpush1.msra.mxu0 0.0
        %389 = vmatprep.subr.mxu0 0.0
        %390 = vmatpush1.msra.mxu0 0.0
        %391 = vmatprep.subr.mxu0 0.0
        %392 = vmatpush1.msra.mxu0 0.0
        %393 = vmatprep.subr.mxu0 0.0
        %394 = vmatpush1.msra.mxu0 0.0
        %395 = vmatprep.subr.mxu0 0.0
        %396 = vmatpush1.msra.mxu0 0.0
        %397 = vmatprep.subr.mxu0 0.0
        %398 = vmatpush1.msra.mxu0 %v363
        %399 = vmatprep.subr.mxu0 0.0
        %400 = vmatpush1.msra.mxu0 %v362
        %401 = vmatprep.subr.mxu0 0.0
        %402 = vmatpush2.msra.mxu0 0.0
        %403 = vmatprep.subr.mxu0 0.0
        %404 = vmatpush2.msra.mxu0 0.0
        %405 = vmatprep.subr.mxu0 0.0
        %406 = vmatpush2.msra.mxu0 0.0
        %407 = vmatprep.subr.mxu0 0.0
        %408 = vmatpush2.msra.mxu0 0.0
        %409 = vmatprep.subr.mxu0 0.0
        %410 = vmatpush2.msra.mxu0 0.0
        %411 = vmatprep.subr.mxu0 0.0
        %412 = vmatpush2.msra.mxu0 0.0
        %413 = vmatprep.subr.mxu0 0.0
        %414 = vmatpush2.msra.mxu0 0.0
        %415 = vmatprep.subr.mxu0 0.0
        %416 = vmatpush2.msra.mxu0 0.0
        %417 = vmatprep.subr.mxu0 0.0
        %418 = vmatpush2.msra.mxu0 0.0
        %419 = vmatprep.subr.mxu0 0.0
        %420 = vmatpush2.msra.mxu0 0.0
        %421 = vmatprep.subr.mxu0 0.0
        %422 = vmatpush2.msra.mxu0 0.0
        %423 = vmatprep.subr.mxu0 0.0
        %424 = vmatpush2.msra.mxu0 0.0
        %425 = vmatprep.subr.mxu0 0.0
        %426 = vmatpush2.msra.mxu0 0.0
        %427 = vmatprep.subr.mxu0 0.0
        %428 = vmatpush2.msra.mxu0 0.0
        %429 = vmatprep.subr.mxu0 0.0
        %430 = vmatpush2.msra.mxu0 0.0
        %431 = vmatprep.subr.mxu0 0.0
        %432 = vmatpush2.msra.mxu0 0.0
        %433 = vmatprep.mubr.f32.mxu0 0.0
        %434 = vmatmul.mubr.f32.gmra.mxu0 %v367
        %v435 = vpop.f32.mrf.mxu0
        %v436 = vadd.f32 %v364, %v435
        %v437 = vpop.f32.mrf.mxu0
        %438 = vdwg.mxu0
        %v439 = vld [vmem:[%s6] sm:$0xff]
        %v440 = vld [vmem:[%s6 + $0x8] sm:$0xff]
        %v442 = vsel %vm365, %v436, 0
        %444 = vmatprep.subr.mxu0 0.0
        %445 = vmatpush1.msra.mxu0 0.0
        %446 = vmatprep.subr.mxu0 0.0
        %447 = vmatpush1.msra.mxu0 0.0
        %448 = vmatprep.subr.mxu0 0.0
        %449 = vmatpush1.msra.mxu0 0.0
        %450 = vmatprep.subr.mxu0 0.0
        %451 = vmatpush1.msra.mxu0 0.0
        %452 = vmatprep.subr.mxu0 0.0
        %453 = vmatpush1.msra.mxu0 0.0
        %454 = vmatprep.subr.mxu0 0.0
        %455 = vmatpush1.msra.mxu0 0.0
        %456 = vmatprep.subr.mxu0 0.0
        %457 = vmatpush1.msra.mxu0 0.0
        %458 = vmatprep.subr.mxu0 0.0
        %459 = vmatpush1.msra.mxu0 0.0
        %460 = vmatprep.subr.mxu0 0.0
        %461 = vmatpush1.msra.mxu0 0.0
        %462 = vmatprep.subr.mxu0 0.0
        %463 = vmatpush1.msra.mxu0 0.0
        %464 = vmatprep.subr.mxu0 0.0
        %465 = vmatpush1.msra.mxu0 0.0
        %466 = vmatprep.subr.mxu0 0.0
        %467 = vmatpush1.msra.mxu0 0.0
        %468 = vmatprep.subr.mxu0 0.0
        %469 = vmatpush1.msra.mxu0 0.0
        %470 = vmatprep.subr.mxu0 0.0
        %471 = vmatpush1.msra.mxu0 0.0
        %472 = vmatprep.subr.mxu0 0.0
        %473 = vmatpush1.msra.mxu0 %v440
        %474 = vmatprep.subr.mxu0 0.0
        %475 = vmatpush1.msra.mxu0 %v439
        %476 = vmatprep.subr.mxu0 0.0
        %477 = vmatpush2.msra.mxu0 0.0
        %478 = vmatprep.subr.mxu0 0.0
        %479 = vmatpush2.msra.mxu0 0.0
        %480 = vmatprep.subr.mxu0 0.0
        %481 = vmatpush2.msra.mxu0 0.0
        %482 = vmatprep.subr.mxu0 0.0
        %483 = vmatpush2.msra.mxu0 0.0
        %484 = vmatprep.subr.mxu0 0.0
        %485 = vmatpush2.msra.mxu0 0.0
        %486 = vmatprep.subr.mxu0 0.0
        %487 = vmatpush2.msra.mxu0 0.0
        %488 = vmatprep.subr.mxu0 0.0
        %489 = vmatpush2.msra.mxu0 0.0
        %490 = vmatprep.subr.mxu0 0.0
        %491 = vmatpush2.msra.mxu0 0.0
        %492 = vmatprep.subr.mxu0 0.0
        %493 = vmatpush2.msra.mxu0 0.0
        %494 = vmatprep.subr.mxu0 0.0
        %495 = vmatpush2.msra.mxu0 0.0
        %496 = vmatprep.subr.mxu0 0.0
        %497 = vmatpush2.msra.mxu0 0.0
        %498 = vmatprep.subr.mxu0 0.0
        %499 = vmatpush2.msra.mxu0 0.0
        %500 = vmatprep.subr.mxu0 0.0
        %501 = vmatpush2.msra.mxu0 0.0
        %502 = vmatprep.subr.mxu0 0.0
        %503 = vmatpush2.msra.mxu0 0.0
        %504 = vmatprep.subr.mxu0 0.0
        %505 = vmatpush2.msra.mxu0 0.0
        %506 = vmatprep.subr.mxu0 0.0
        %507 = vmatpush2.msra.mxu0 0.0
        %508 = vmatprep.mubr.f32.mxu0 0.0
        %509 = vmatmul.mubr.f32.gmra.mxu0 %v442
        %v510 = vpop.f32.mrf.mxu0
        %v511 = vadd.f32 0.0, %v510
        %v512 = vpop.f32.mrf.mxu0
        %513 = vdwg.mxu0
        %vm514 = vcmask 261120
        %v516 = vsel %vm514, %v511, 0
        %v519 = vsel %vm514, %v337, 0
        %521 = vmatprep.subr.mxu0 0.0
        %522 = vmatpush1.xpose.msra.mxu0 0.0
        %523 = vmatprep.subr.mxu0 0.0
        %524 = vmatpush1.xpose.msra.mxu0 0.0
        %525 = vmatprep.subr.mxu0 0.0
        %526 = vmatpush1.xpose.msra.mxu0 0.0
        %527 = vmatprep.subr.mxu0 0.0
        %528 = vmatpush1.xpose.msra.mxu0 0.0
        %529 = vmatprep.subr.mxu0 0.0
        %530 = vmatpush1.xpose.msra.mxu0 0.0
        %531 = vmatprep.subr.mxu0 0.0
        %532 = vmatpush1.xpose.msra.mxu0 0.0
        %533 = vmatprep.subr.mxu0 0.0
        %534 = vmatpush1.xpose.msra.mxu0 0.0
        %535 = vmatprep.subr.mxu0 0.0
        %536 = vmatpush1.xpose.msra.mxu0 0.0
        %537 = vmatprep.subr.mxu0 0.0
        %538 = vmatpush1.xpose.msra.mxu0 0.0
        %539 = vmatprep.subr.mxu0 0.0
        %540 = vmatpush1.xpose.msra.mxu0 0.0
        %541 = vmatprep.subr.mxu0 0.0
        %542 = vmatpush1.xpose.msra.mxu0 0.0
        %543 = vmatprep.subr.mxu0 0.0
        %544 = vmatpush1.xpose.msra.mxu0 0.0
        %545 = vmatprep.subr.mxu0 0.0
        %546 = vmatpush1.xpose.msra.mxu0 0.0
        %547 = vmatprep.subr.mxu0 0.0
        %548 = vmatpush1.xpose.msra.mxu0 0.0
        %549 = vmatprep.subr.mxu0 0.0
        %550 = vmatpush1.xpose.msra.mxu0 0.0
        %551 = vmatprep.subr.mxu0 0.0
        %552 = vmatpush1.xpose.msra.mxu0 %v519
        %553 = vmatprep.subr.mxu0 0.0
        %554 = vmatpush2.xpose.msra.mxu0 0.0
        %555 = vmatprep.subr.mxu0 0.0
        %556 = vmatpush2.xpose.msra.mxu0 0.0
        %557 = vmatprep.subr.mxu0 0.0
        %558 = vmatpush2.xpose.msra.mxu0 0.0
        %559 = vmatprep.subr.mxu0 0.0
        %560 = vmatpush2.xpose.msra.mxu0 0.0
        %561 = vmatprep.subr.mxu0 0.0
        %562 = vmatpush2.xpose.msra.mxu0 0.0
        %563 = vmatprep.subr.mxu0 0.0
        %564 = vmatpush2.xpose.msra.mxu0 0.0
        %565 = vmatprep.subr.mxu0 0.0
        %566 = vmatpush2.xpose.msra.mxu0 0.0
        %567 = vmatprep.subr.mxu0 0.0
        %568 = vmatpush2.xpose.msra.mxu0 0.0
        %569 = vmatprep.subr.mxu0 0.0
        %570 = vmatpush2.xpose.msra.mxu0 0.0
        %571 = vmatprep.subr.mxu0 0.0
        %572 = vmatpush2.xpose.msra.mxu0 0.0
        %573 = vmatprep.subr.mxu0 0.0
        %574 = vmatpush2.xpose.msra.mxu0 0.0
        %575 = vmatprep.subr.mxu0 0.0
        %576 = vmatpush2.xpose.msra.mxu0 0.0
        %577 = vmatprep.subr.mxu0 0.0
        %578 = vmatpush2.xpose.msra.mxu0 0.0
        %579 = vmatprep.subr.mxu0 0.0
        %580 = vmatpush2.xpose.msra.mxu0 0.0
        %581 = vmatprep.subr.mxu0 0.0
        %582 = vmatpush2.xpose.msra.mxu0 0.0
        %583 = vmatprep.subr.mxu0 0.0
        %584 = vmatpush2.xpose.msra.mxu0 0.0
        %585 = vmatprep.mubr.f32.mxu0 0.0
        %586 = vmatmul.mubr.f32.gmra.mxu0 %v516
        %v587 = vpop.f32.mrf.mxu0
        %v588 = vadd.f32 0.0, %v587
        %v589 = vpop.f32.mrf.mxu0
        %590 = vdwg.mxu0
        %v592 = vsel %vm514, %v338, 0
        %594 = vmatprep.subr.mxu0 0.0
        %595 = vmatpush1.xpose.msra.mxu0 0.0
        %596 = vmatprep.subr.mxu0 0.0
        %597 = vmatpush1.xpose.msra.mxu0 0.0
        %598 = vmatprep.subr.mxu0 0.0
        %599 = vmatpush1.xpose.msra.mxu0 0.0
        %600 = vmatprep.subr.mxu0 0.0
        %601 = vmatpush1.xpose.msra.mxu0 0.0
        %602 = vmatprep.subr.mxu0 0.0
        %603 = vmatpush1.xpose.msra.mxu0 0.0
        %604 = vmatprep.subr.mxu0 0.0
        %605 = vmatpush1.xpose.msra.mxu0 0.0
        %606 = vmatprep.subr.mxu0 0.0
        %607 = vmatpush1.xpose.msra.mxu0 0.0
        %608 = vmatprep.subr.mxu0 0.0
        %609 = vmatpush1.xpose.msra.mxu0 0.0
        %610 = vmatprep.subr.mxu0 0.0
        %611 = vmatpush1.xpose.msra.mxu0 0.0
        %612 = vmatprep.subr.mxu0 0.0
        %613 = vmatpush1.xpose.msra.mxu0 0.0
        %614 = vmatprep.subr.mxu0 0.0
        %615 = vmatpush1.xpose.msra.mxu0 0.0
        %616 = vmatprep.subr.mxu0 0.0
        %617 = vmatpush1.xpose.msra.mxu0 0.0
        %618 = vmatprep.subr.mxu0 0.0
        %619 = vmatpush1.xpose.msra.mxu0 0.0
        %620 = vmatprep.subr.mxu0 0.0
        %621 = vmatpush1.xpose.msra.mxu0 0.0
        %622 = vmatprep.subr.mxu0 0.0
        %623 = vmatpush1.xpose.msra.mxu0 0.0
        %624 = vmatprep.subr.mxu0 0.0
        %625 = vmatpush1.xpose.msra.mxu0 %v592
        %626 = vmatprep.subr.mxu0 0.0
        %627 = vmatpush2.xpose.msra.mxu0 0.0
        %628 = vmatprep.subr.mxu0 0.0
        %629 = vmatpush2.xpose.msra.mxu0 0.0
        %630 = vmatprep.subr.mxu0 0.0
        %631 = vmatpush2.xpose.msra.mxu0 0.0
        %632 = vmatprep.subr.mxu0 0.0
        %633 = vmatpush2.xpose.msra.mxu0 0.0
        %634 = vmatprep.subr.mxu0 0.0
        %635 = vmatpush2.xpose.msra.mxu0 0.0
        %636 = vmatprep.subr.mxu0 0.0
        %637 = vmatpush2.xpose.msra.mxu0 0.0
        %638 = vmatprep.subr.mxu0 0.0
        %639 = vmatpush2.xpose.msra.mxu0 0.0
        %640 = vmatprep.subr.mxu0 0.0
        %641 = vmatpush2.xpose.msra.mxu0 0.0
        %642 = vmatprep.subr.mxu0 0.0
        %643 = vmatpush2.xpose.msra.mxu0 0.0
        %644 = vmatprep.subr.mxu0 0.0
        %645 = vmatpush2.xpose.msra.mxu0 0.0
        %646 = vmatprep.subr.mxu0 0.0
        %647 = vmatpush2.xpose.msra.mxu0 0.0
        %648 = vmatprep.subr.mxu0 0.0
        %649 = vmatpush2.xpose.msra.mxu0 0.0
        %650 = vmatprep.subr.mxu0 0.0
        %651 = vmatpush2.xpose.msra.mxu0 0.0
        %652 = vmatprep.subr.mxu0 0.0
        %653 = vmatpush2.xpose.msra.mxu0 0.0
        %654 = vmatprep.subr.mxu0 0.0
        %655 = vmatpush2.xpose.msra.mxu0 0.0
        %656 = vmatprep.subr.mxu0 0.0
        %657 = vmatpush2.xpose.msra.mxu0 0.0
        %658 = vmatprep.mubr.f32.mxu0 0.0
        %659 = vmatmul.mubr.f32.gmra.mxu0 %v516
        %v660 = vpop.f32.mrf.mxu0
        %v661 = vadd.f32 0.0, %v660
        %v662 = vpop.f32.mrf.mxu0
        %663 = vdwg.mxu0
        %v665 = vsel %vm514, %v339, 0
        %667 = vmatprep.subr.mxu0 0.0
        %668 = vmatpush1.xpose.msra.mxu0 0.0
        %669 = vmatprep.subr.mxu0 0.0
        %670 = vmatpush1.xpose.msra.mxu0 0.0
        %671 = vmatprep.subr.mxu0 0.0
        %672 = vmatpush1.xpose.msra.mxu0 0.0
        %673 = vmatprep.subr.mxu0 0.0
        %674 = vmatpush1.xpose.msra.mxu0 0.0
        %675 = vmatprep.subr.mxu0 0.0
        %676 = vmatpush1.xpose.msra.mxu0 0.0
        %677 = vmatprep.subr.mxu0 0.0
        %678 = vmatpush1.xpose.msra.mxu0 0.0
        %679 = vmatprep.subr.mxu0 0.0
        %680 = vmatpush1.xpose.msra.mxu0 0.0
        %681 = vmatprep.subr.mxu0 0.0
        %682 = vmatpush1.xpose.msra.mxu0 0.0
        %683 = vmatprep.subr.mxu0 0.0
        %684 = vmatpush1.xpose.msra.mxu0 0.0
        %685 = vmatprep.subr.mxu0 0.0
        %686 = vmatpush1.xpose.msra.mxu0 0.0
        %687 = vmatprep.subr.mxu0 0.0
        %688 = vmatpush1.xpose.msra.mxu0 0.0
        %689 = vmatprep.subr.mxu0 0.0
        %690 = vmatpush1.xpose.msra.mxu0 0.0
        %691 = vmatprep.subr.mxu0 0.0
        %692 = vmatpush1.xpose.msra.mxu0 0.0
        %693 = vmatprep.subr.mxu0 0.0
        %694 = vmatpush1.xpose.msra.mxu0 0.0
        %695 = vmatprep.subr.mxu0 0.0
        %696 = vmatpush1.xpose.msra.mxu0 0.0
        %697 = vmatprep.subr.mxu0 0.0
        %698 = vmatpush1.xpose.msra.mxu0 %v665
        %699 = vmatprep.subr.mxu0 0.0
        %700 = vmatpush2.xpose.msra.mxu0 0.0
        %701 = vmatprep.subr.mxu0 0.0
        %702 = vmatpush2.xpose.msra.mxu0 0.0
        %703 = vmatprep.subr.mxu0 0.0
        %704 = vmatpush2.xpose.msra.mxu0 0.0
        %705 = vmatprep.subr.mxu0 0.0
        %706 = vmatpush2.xpose.msra.mxu0 0.0
        %707 = vmatprep.subr.mxu0 0.0
        %708 = vmatpush2.xpose.msra.mxu0 0.0
        %709 = vmatprep.subr.mxu0 0.0
        %710 = vmatpush2.xpose.msra.mxu0 0.0
        %711 = vmatprep.subr.mxu0 0.0
        %712 = vmatpush2.xpose.msra.mxu0 0.0
        %713 = vmatprep.subr.mxu0 0.0
        %714 = vmatpush2.xpose.msra.mxu0 0.0
        %715 = vmatprep.subr.mxu0 0.0
        %716 = vmatpush2.xpose.msra.mxu0 0.0
        %717 = vmatprep.subr.mxu0 0.0
        %718 = vmatpush2.xpose.msra.mxu0 0.0
        %719 = vmatprep.subr.mxu0 0.0
        %720 = vmatpush2.xpose.msra.mxu0 0.0
        %721 = vmatprep.subr.mxu0 0.0
        %722 = vmatpush2.xpose.msra.mxu0 0.0
        %723 = vmatprep.subr.mxu0 0.0
        %724 = vmatpush2.xpose.msra.mxu0 0.0
        %725 = vmatprep.subr.mxu0 0.0
        %726 = vmatpush2.xpose.msra.mxu0 0.0
        %727 = vmatprep.subr.mxu0 0.0
        %728 = vmatpush2.xpose.msra.mxu0 0.0
        %729 = vmatprep.subr.mxu0 0.0
        %730 = vmatpush2.xpose.msra.mxu0 0.0
        %731 = vmatprep.mubr.f32.mxu0 0.0
        %732 = vmatmul.mubr.f32.gmra.mxu0 %v516
        %v733 = vpop.f32.mrf.mxu0
        %v734 = vadd.f32 0.0, %v733
        %v735 = vpop.f32.mrf.mxu0
        %736 = vdwg.mxu0
        %v738 = vsel %vm514, %v340, 0
        %740 = vmatprep.subr.mxu0 0.0
        %741 = vmatpush1.xpose.msra.mxu0 0.0
        %742 = vmatprep.subr.mxu0 0.0
        %743 = vmatpush1.xpose.msra.mxu0 0.0
        %744 = vmatprep.subr.mxu0 0.0
        %745 = vmatpush1.xpose.msra.mxu0 0.0
        %746 = vmatprep.subr.mxu0 0.0
        %747 = vmatpush1.xpose.msra.mxu0 0.0
        %748 = vmatprep.subr.mxu0 0.0
        %749 = vmatpush1.xpose.msra.mxu0 0.0
        %750 = vmatprep.subr.mxu0 0.0
        %751 = vmatpush1.xpose.msra.mxu0 0.0
        %752 = vmatprep.subr.mxu0 0.0
        %753 = vmatpush1.xpose.msra.mxu0 0.0
        %754 = vmatprep.subr.mxu0 0.0
        %755 = vmatpush1.xpose.msra.mxu0 0.0
        %756 = vmatprep.subr.mxu0 0.0
        %757 = vmatpush1.xpose.msra.mxu0 0.0
        %758 = vmatprep.subr.mxu0 0.0
        %759 = vmatpush1.xpose.msra.mxu0 0.0
        %760 = vmatprep.subr.mxu0 0.0
        %761 = vmatpush1.xpose.msra.mxu0 0.0
        %762 = vmatprep.subr.mxu0 0.0
        %763 = vmatpush1.xpose.msra.mxu0 0.0
        %764 = vmatprep.subr.mxu0 0.0
        %765 = vmatpush1.xpose.msra.mxu0 0.0
        %766 = vmatprep.subr.mxu0 0.0
        %767 = vmatpush1.xpose.msra.mxu0 0.0
        %768 = vmatprep.subr.mxu0 0.0
        %769 = vmatpush1.xpose.msra.mxu0 0.0
        %770 = vmatprep.subr.mxu0 0.0
        %771 = vmatpush1.xpose.msra.mxu0 %v738
        %772 = vmatprep.subr.mxu0 0.0
        %773 = vmatpush2.xpose.msra.mxu0 0.0
        %774 = vmatprep.subr.mxu0 0.0
        %775 = vmatpush2.xpose.msra.mxu0 0.0
        %776 = vmatprep.subr.mxu0 0.0
        %777 = vmatpush2.xpose.msra.mxu0 0.0
        %778 = vmatprep.subr.mxu0 0.0
        %779 = vmatpush2.xpose.msra.mxu0 0.0
        %780 = vmatprep.subr.mxu0 0.0
        %781 = vmatpush2.xpose.msra.mxu0 0.0
        %782 = vmatprep.subr.mxu0 0.0
        %783 = vmatpush2.xpose.msra.mxu0 0.0
        %784 = vmatprep.subr.mxu0 0.0
        %785 = vmatpush2.xpose.msra.mxu0 0.0
        %786 = vmatprep.subr.mxu0 0.0
        %787 = vmatpush2.xpose.msra.mxu0 0.0
        %788 = vmatprep.subr.mxu0 0.0
        %789 = vmatpush2.xpose.msra.mxu0 0.0
        %790 = vmatprep.subr.mxu0 0.0
        %791 = vmatpush2.xpose.msra.mxu0 0.0
        %792 = vmatprep.subr.mxu0 0.0
        %793 = vmatpush2.xpose.msra.mxu0 0.0
        %794 = vmatprep.subr.mxu0 0.0
        %795 = vmatpush2.xpose.msra.mxu0 0.0
        %796 = vmatprep.subr.mxu0 0.0
        %797 = vmatpush2.xpose.msra.mxu0 0.0
        %798 = vmatprep.subr.mxu0 0.0
        %799 = vmatpush2.xpose.msra.mxu0 0.0
        %800 = vmatprep.subr.mxu0 0.0
        %801 = vmatpush2.xpose.msra.mxu0 0.0
        %802 = vmatprep.subr.mxu0 0.0
        %803 = vmatpush2.xpose.msra.mxu0 0.0
        %804 = vmatprep.mubr.f32.mxu0 0.0
        %805 = vmatmul.mubr.f32.gmra.mxu0 %v516
        %v806 = vpop.f32.mrf.mxu0
        %v807 = vadd.f32 0.0, %v806
        %v808 = vpop.f32.mrf.mxu0
        %809 = vdwg.mxu0
        %v811 = vsel %vm514, %v341, 0
        %813 = vmatprep.subr.mxu0 0.0
        %814 = vmatpush1.xpose.msra.mxu0 0.0
        %815 = vmatprep.subr.mxu0 0.0
        %816 = vmatpush1.xpose.msra.mxu0 0.0
        %817 = vmatprep.subr.mxu0 0.0
        %818 = vmatpush1.xpose.msra.mxu0 0.0
        %819 = vmatprep.subr.mxu0 0.0
        %820 = vmatpush1.xpose.msra.mxu0 0.0
        %821 = vmatprep.subr.mxu0 0.0
        %822 = vmatpush1.xpose.msra.mxu0 0.0
        %823 = vmatprep.subr.mxu0 0.0
        %824 = vmatpush1.xpose.msra.mxu0 0.0
        %825 = vmatprep.subr.mxu0 0.0
        %826 = vmatpush1.xpose.msra.mxu0 0.0
        %827 = vmatprep.subr.mxu0 0.0
        %828 = vmatpush1.xpose.msra.mxu0 0.0
        %829 = vmatprep.subr.mxu0 0.0
        %830 = vmatpush1.xpose.msra.mxu0 0.0
        %831 = vmatprep.subr.mxu0 0.0
        %832 = vmatpush1.xpose.msra.mxu0 0.0
        %833 = vmatprep.subr.mxu0 0.0
        %834 = vmatpush1.xpose.msra.mxu0 0.0
        %835 = vmatprep.subr.mxu0 0.0
        %836 = vmatpush1.xpose.msra.mxu0 0.0
        %837 = vmatprep.subr.mxu0 0.0
        %838 = vmatpush1.xpose.msra.mxu0 0.0
        %839 = vmatprep.subr.mxu0 0.0
        %840 = vmatpush1.xpose.msra.mxu0 0.0
        %841 = vmatprep.subr.mxu0 0.0
        %842 = vmatpush1.xpose.msra.mxu0 0.0
        %843 = vmatprep.subr.mxu0 0.0
        %844 = vmatpush1.xpose.msra.mxu0 %v811
        %845 = vmatprep.subr.mxu0 0.0
        %846 = vmatpush2.xpose.msra.mxu0 0.0
        %847 = vmatprep.subr.mxu0 0.0
        %848 = vmatpush2.xpose.msra.mxu0 0.0
        %849 = vmatprep.subr.mxu0 0.0
        %850 = vmatpush2.xpose.msra.mxu0 0.0
        %851 = vmatprep.subr.mxu0 0.0
        %852 = vmatpush2.xpose.msra.mxu0 0.0
        %853 = vmatprep.subr.mxu0 0.0
        %854 = vmatpush2.xpose.msra.mxu0 0.0
        %855 = vmatprep.subr.mxu0 0.0
        %856 = vmatpush2.xpose.msra.mxu0 0.0
        %857 = vmatprep.subr.mxu0 0.0
        %858 = vmatpush2.xpose.msra.mxu0 0.0
        %859 = vmatprep.subr.mxu0 0.0
        %860 = vmatpush2.xpose.msra.mxu0 0.0
        %861 = vmatprep.subr.mxu0 0.0
        %862 = vmatpush2.xpose.msra.mxu0 0.0
        %863 = vmatprep.subr.mxu0 0.0
        %864 = vmatpush2.xpose.msra.mxu0 0.0
        %865 = vmatprep.subr.mxu0 0.0
        %866 = vmatpush2.xpose.msra.mxu0 0.0
        %867 = vmatprep.subr.mxu0 0.0
        %868 = vmatpush2.xpose.msra.mxu0 0.0
        %869 = vmatprep.subr.mxu0 0.0
        %870 = vmatpush2.xpose.msra.mxu0 0.0
        %871 = vmatprep.subr.mxu0 0.0
        %872 = vmatpush2.xpose.msra.mxu0 0.0
        %873 = vmatprep.subr.mxu0 0.0
        %874 = vmatpush2.xpose.msra.mxu0 0.0
        %875 = vmatprep.subr.mxu0 0.0
        %876 = vmatpush2.xpose.msra.mxu0 0.0
        %877 = vmatprep.mubr.f32.mxu0 0.0
        %878 = vmatmul.mubr.f32.gmra.mxu0 %v516
        %v879 = vpop.f32.mrf.mxu0
        %v880 = vadd.f32 0.0, %v879
        %v881 = vpop.f32.mrf.mxu0
        %882 = vdwg.mxu0
        %v884 = vsel %vm514, %v342, 0
        %886 = vmatprep.subr.mxu0 0.0
        %887 = vmatpush1.xpose.msra.mxu0 0.0
        %888 = vmatprep.subr.mxu0 0.0
        %889 = vmatpush1.xpose.msra.mxu0 0.0
        %890 = vmatprep.subr.mxu0 0.0
        %891 = vmatpush1.xpose.msra.mxu0 0.0
        %892 = vmatprep.subr.mxu0 0.0
        %893 = vmatpush1.xpose.msra.mxu0 0.0
        %894 = vmatprep.subr.mxu0 0.0
        %895 = vmatpush1.xpose.msra.mxu0 0.0
        %896 = vmatprep.subr.mxu0 0.0
        %897 = vmatpush1.xpose.msra.mxu0 0.0
        %898 = vmatprep.subr.mxu0 0.0
        %899 = vmatpush1.xpose.msra.mxu0 0.0
        %900 = vmatprep.subr.mxu0 0.0
        %901 = vmatpush1.xpose.msra.mxu0 0.0
        %902 = vmatprep.subr.mxu0 0.0
        %903 = vmatpush1.xpose.msra.mxu0 0.0
        %904 = vmatprep.subr.mxu0 0.0
        %905 = vmatpush1.xpose.msra.mxu0 0.0
        %906 = vmatprep.subr.mxu0 0.0
        %907 = vmatpush1.xpose.msra.mxu0 0.0
        %908 = vmatprep.subr.mxu0 0.0
        %909 = vmatpush1.xpose.msra.mxu0 0.0
        %910 = vmatprep.subr.mxu0 0.0
        %911 = vmatpush1.xpose.msra.mxu0 0.0
        %912 = vmatprep.subr.mxu0 0.0
        %913 = vmatpush1.xpose.msra.mxu0 0.0
        %914 = vmatprep.subr.mxu0 0.0
        %915 = vmatpush1.xpose.msra.mxu0 0.0
        %916 = vmatprep.subr.mxu0 0.0
        %917 = vmatpush1.xpose.msra.mxu0 %v884
        %918 = vmatprep.subr.mxu0 0.0
        %919 = vmatpush2.xpose.msra.mxu0 0.0
        %920 = vmatprep.subr.mxu0 0.0
        %921 = vmatpush2.xpose.msra.mxu0 0.0
        %922 = vmatprep.subr.mxu0 0.0
        %923 = vmatpush2.xpose.msra.mxu0 0.0
        %924 = vmatprep.subr.mxu0 0.0
        %925 = vmatpush2.xpose.msra.mxu0 0.0
        %926 = vmatprep.subr.mxu0 0.0
        %927 = vmatpush2.xpose.msra.mxu0 0.0
        %928 = vmatprep.subr.mxu0 0.0
        %929 = vmatpush2.xpose.msra.mxu0 0.0
        %930 = vmatprep.subr.mxu0 0.0
        %931 = vmatpush2.xpose.msra.mxu0 0.0
        %932 = vmatprep.subr.mxu0 0.0
        %933 = vmatpush2.xpose.msra.mxu0 0.0
        %934 = vmatprep.subr.mxu0 0.0
        %935 = vmatpush2.xpose.msra.mxu0 0.0
        %936 = vmatprep.subr.mxu0 0.0
        %937 = vmatpush2.xpose.msra.mxu0 0.0
        %938 = vmatprep.subr.mxu0 0.0
        %939 = vmatpush2.xpose.msra.mxu0 0.0
        %940 = vmatprep.subr.mxu0 0.0
        %941 = vmatpush2.xpose.msra.mxu0 0.0
        %942 = vmatprep.subr.mxu0 0.0
        %943 = vmatpush2.xpose.msra.mxu0 0.0
        %944 = vmatprep.subr.mxu0 0.0
        %945 = vmatpush2.xpose.msra.mxu0 0.0
        %946 = vmatprep.subr.mxu0 0.0
        %947 = vmatpush2.xpose.msra.mxu0 0.0
        %948 = vmatprep.subr.mxu0 0.0
        %949 = vmatpush2.xpose.msra.mxu0 0.0
        %950 = vmatprep.mubr.f32.mxu0 0.0
        %951 = vmatmul.mubr.f32.gmra.mxu0 %v516
        %v952 = vpop.f32.mrf.mxu0
        %v953 = vadd.f32 0.0, %v952
        %v954 = vpop.f32.mrf.mxu0
        %955 = vdwg.mxu0
        %v957 = vsel %vm514, %v343, 0
        %959 = vmatprep.subr.mxu0 0.0
        %960 = vmatpush1.xpose.msra.mxu0 0.0
        %961 = vmatprep.subr.mxu0 0.0
        %962 = vmatpush1.xpose.msra.mxu0 0.0
        %963 = vmatprep.subr.mxu0 0.0
        %964 = vmatpush1.xpose.msra.mxu0 0.0
        %965 = vmatprep.subr.mxu0 0.0
        %966 = vmatpush1.xpose.msra.mxu0 0.0
        %967 = vmatprep.subr.mxu0 0.0
        %968 = vmatpush1.xpose.msra.mxu0 0.0
        %969 = vmatprep.subr.mxu0 0.0
        %970 = vmatpush1.xpose.msra.mxu0 0.0
        %971 = vmatprep.subr.mxu0 0.0
        %972 = vmatpush1.xpose.msra.mxu0 0.0
        %973 = vmatprep.subr.mxu0 0.0
        %974 = vmatpush1.xpose.msra.mxu0 0.0
        %975 = vmatprep.subr.mxu0 0.0
        %976 = vmatpush1.xpose.msra.mxu0 0.0
        %977 = vmatprep.subr.mxu0 0.0
        %978 = vmatpush1.xpose.msra.mxu0 0.0
        %979 = vmatprep.subr.mxu0 0.0
        %980 = vmatpush1.xpose.msra.mxu0 0.0
        %981 = vmatprep.subr.mxu0 0.0
        %982 = vmatpush1.xpose.msra.mxu0 0.0
        %983 = vmatprep.subr.mxu0 0.0
        %984 = vmatpush1.xpose.msra.mxu0 0.0
        %985 = vmatprep.subr.mxu0 0.0
        %986 = vmatpush1.xpose.msra.mxu0 0.0
        %987 = vmatprep.subr.mxu0 0.0
        %988 = vmatpush1.xpose.msra.mxu0 0.0
        %989 = vmatprep.subr.mxu0 0.0
        %990 = vmatpush1.xpose.msra.mxu0 %v957
        %991 = vmatprep.subr.mxu0 0.0
        %992 = vmatpush2.xpose.msra.mxu0 0.0
        %993 = vmatprep.subr.mxu0 0.0
        %994 = vmatpush2.xpose.msra.mxu0 0.0
        %995 = vmatprep.subr.mxu0 0.0
        %996 = vmatpush2.xpose.msra.mxu0 0.0
        %997 = vmatprep.subr.mxu0 0.0
        %998 = vmatpush2.xpose.msra.mxu0 0.0
        %999 = vmatprep.subr.mxu0 0.0
        %1000 = vmatpush2.xpose.msra.mxu0 0.0
        %1001 = vmatprep.subr.mxu0 0.0
        %1002 = vmatpush2.xpose.msra.mxu0 0.0
        %1003 = vmatprep.subr.mxu0 0.0
        %1004 = vmatpush2.xpose.msra.mxu0 0.0
        %1005 = vmatprep.subr.mxu0 0.0
        %1006 = vmatpush2.xpose.msra.mxu0 0.0
        %1007 = vmatprep.subr.mxu0 0.0
        %1008 = vmatpush2.xpose.msra.mxu0 0.0
        %1009 = vmatprep.subr.mxu0 0.0
        %1010 = vmatpush2.xpose.msra.mxu0 0.0
        %1011 = vmatprep.subr.mxu0 0.0
        %1012 = vmatpush2.xpose.msra.mxu0 0.0
        %1013 = vmatprep.subr.mxu0 0.0
        %1014 = vmatpush2.xpose.msra.mxu0 0.0
        %1015 = vmatprep.subr.mxu0 0.0
        %1016 = vmatpush2.xpose.msra.mxu0 0.0
        %1017 = vmatprep.subr.mxu0 0.0
        %1018 = vmatpush2.xpose.msra.mxu0 0.0
        %1019 = vmatprep.subr.mxu0 0.0
        %1020 = vmatpush2.xpose.msra.mxu0 0.0
        %1021 = vmatprep.subr.mxu0 0.0
        %1022 = vmatpush2.xpose.msra.mxu0 0.0
        %1023 = vmatprep.mubr.f32.mxu0 0.0
        %1024 = vmatmul.mubr.f32.gmra.mxu0 %v516
        %v1025 = vpop.f32.mrf.mxu0
        %v1026 = vadd.f32 0.0, %v1025
        %v1027 = vpop.f32.mrf.mxu0
        %1028 = vdwg.mxu0
        %v1030 = vsel %vm514, %v344, 0
        %1032 = vmatprep.subr.mxu0 0.0
        %1033 = vmatpush1.xpose.msra.mxu0 0.0
        %1034 = vmatprep.subr.mxu0 0.0
        %1035 = vmatpush1.xpose.msra.mxu0 0.0
        %1036 = vmatprep.subr.mxu0 0.0
        %1037 = vmatpush1.xpose.msra.mxu0 0.0
        %1038 = vmatprep.subr.mxu0 0.0
        %1039 = vmatpush1.xpose.msra.mxu0 0.0
        %1040 = vmatprep.subr.mxu0 0.0
        %1041 = vmatpush1.xpose.msra.mxu0 0.0
        %1042 = vmatprep.subr.mxu0 0.0
        %1043 = vmatpush1.xpose.msra.mxu0 0.0
        %1044 = vmatprep.subr.mxu0 0.0
        %1045 = vmatpush1.xpose.msra.mxu0 0.0
        %1046 = vmatprep.subr.mxu0 0.0
        %1047 = vmatpush1.xpose.msra.mxu0 0.0
        %1048 = vmatprep.subr.mxu0 0.0
        %1049 = vmatpush1.xpose.msra.mxu0 0.0
        %1050 = vmatprep.subr.mxu0 0.0
        %1051 = vmatpush1.xpose.msra.mxu0 0.0
        %1052 = vmatprep.subr.mxu0 0.0
        %1053 = vmatpush1.xpose.msra.mxu0 0.0
        %1054 = vmatprep.subr.mxu0 0.0
        %1055 = vmatpush1.xpose.msra.mxu0 0.0
        %1056 = vmatprep.subr.mxu0 0.0
        %1057 = vmatpush1.xpose.msra.mxu0 0.0
        %1058 = vmatprep.subr.mxu0 0.0
        %1059 = vmatpush1.xpose.msra.mxu0 0.0
        %1060 = vmatprep.subr.mxu0 0.0
        %1061 = vmatpush1.xpose.msra.mxu0 0.0
        %1062 = vmatprep.subr.mxu0 0.0
        %1063 = vmatpush1.xpose.msra.mxu0 %v1030
        %1064 = vmatprep.subr.mxu0 0.0
        %1065 = vmatpush2.xpose.msra.mxu0 0.0
        %1066 = vmatprep.subr.mxu0 0.0
        %1067 = vmatpush2.xpose.msra.mxu0 0.0
        %1068 = vmatprep.subr.mxu0 0.0
        %1069 = vmatpush2.xpose.msra.mxu0 0.0
        %1070 = vmatprep.subr.mxu0 0.0
        %1071 = vmatpush2.xpose.msra.mxu0 0.0
        %1072 = vmatprep.subr.mxu0 0.0
        %1073 = vmatpush2.xpose.msra.mxu0 0.0
        %1074 = vmatprep.subr.mxu0 0.0
        %1075 = vmatpush2.xpose.msra.mxu0 0.0
        %1076 = vmatprep.subr.mxu0 0.0
        %1077 = vmatpush2.xpose.msra.mxu0 0.0
        %1078 = vmatprep.subr.mxu0 0.0
        %1079 = vmatpush2.xpose.msra.mxu0 0.0
        %1080 = vmatprep.subr.mxu0 0.0
        %1081 = vmatpush2.xpose.msra.mxu0 0.0
        %1082 = vmatprep.subr.mxu0 0.0
        %1083 = vmatpush2.xpose.msra.mxu0 0.0
        %1084 = vmatprep.subr.mxu0 0.0
        %1085 = vmatpush2.xpose.msra.mxu0 0.0
        %1086 = vmatprep.subr.mxu0 0.0
        %1087 = vmatpush2.xpose.msra.mxu0 0.0
        %1088 = vmatprep.subr.mxu0 0.0
        %1089 = vmatpush2.xpose.msra.mxu0 0.0
        %1090 = vmatprep.subr.mxu0 0.0
        %1091 = vmatpush2.xpose.msra.mxu0 0.0
        %1092 = vmatprep.subr.mxu0 0.0
        %1093 = vmatpush2.xpose.msra.mxu0 0.0
        %1094 = vmatprep.subr.mxu0 0.0
        %1095 = vmatpush2.xpose.msra.mxu0 0.0
        %1096 = vmatprep.mubr.f32.mxu0 0.0
        %1097 = vmatmul.mubr.f32.gmra.mxu0 %v516
        %v1098 = vpop.f32.mrf.mxu0
        %v1099 = vadd.f32 0.0, %v1098
        %v1100 = vpop.f32.mrf.mxu0
        %1101 = vdwg.mxu0
        %v1102 = vmul.f32 %v588, 0.25
        %v1103 = vmul.f32 %v661, 0.25
        %v1104 = vmul.f32 %v734, 0.25
        %v1105 = vmul.f32 %v807, 0.25
        %v1106 = vmul.f32 %v880, 0.25
        %v1107 = vmul.f32 %v953, 0.25
        %v1108 = vmul.f32 %v1026, 0.25
        %v1109 = vmul.f32 %v1099, 0.25
        %v1110 = vlaneseq
        %v1111 = vand.u32 %v1110, 127
        %1112 = vset.pattern.permute.xlu0 0
        %1113 = vperm.xlu0 %1112, %v345
        %v1114 = vpop.permute.xlu0 %1113
        %v1115 = vlaneseq
        %v1116 = vshrl.u32 %v1115, 7
        %v1117 = vsub.s32 0, %v1116
        %v1118 = vrot.slane %v1114, %v1117
        %1119 = vset.pattern.permute.xlu0 0
        %1120 = vperm.xlu0 %1119, %v346
        %v1121 = vpop.permute.xlu0 %1120
        %v1122 = vlaneseq
        %v1123 = vshrl.u32 %v1122, 7
        %v1124 = vsub.s32 0, %v1123
        %v1125 = vrot.slane %v1121, %v1124
        %1126 = vset.pattern.permute.xlu0 0
        %1127 = vperm.xlu0 %1126, %v347
        %v1128 = vpop.permute.xlu0 %1127
        %v1129 = vlaneseq
        %v1130 = vshrl.u32 %v1129, 7
        %v1131 = vsub.s32 0, %v1130
        %v1132 = vrot.slane %v1128, %v1131
        %1133 = vset.pattern.permute.xlu0 0
        %1134 = vperm.xlu0 %1133, %v348
        %v1135 = vpop.permute.xlu0 %1134
        %v1136 = vlaneseq
        %v1137 = vshrl.u32 %v1136, 7
        %v1138 = vsub.s32 0, %v1137
        %v1139 = vrot.slane %v1135, %v1138
        %1140 = vset.pattern.permute.xlu0 0
        %1141 = vperm.xlu0 %1140, %v349
        %v1142 = vpop.permute.xlu0 %1141
        %v1143 = vlaneseq
        %v1144 = vshrl.u32 %v1143, 7
        %v1145 = vsub.s32 0, %v1144
        %v1146 = vrot.slane %v1142, %v1145
        %1147 = vset.pattern.permute.xlu0 0
        %1148 = vperm.xlu0 %1147, %v350
        %v1149 = vpop.permute.xlu0 %1148
        %v1150 = vlaneseq
        %v1151 = vshrl.u32 %v1150, 7
        %v1152 = vsub.s32 0, %v1151
        %v1153 = vrot.slane %v1149, %v1152
        %1154 = vset.pattern.permute.xlu0 0
        %1155 = vperm.xlu0 %1154, %v351
        %v1156 = vpop.permute.xlu0 %1155
        %v1157 = vlaneseq
        %v1158 = vshrl.u32 %v1157, 7
        %v1159 = vsub.s32 0, %v1158
        %v1160 = vrot.slane %v1156, %v1159
        %1161 = vset.pattern.permute.xlu0 0
        %1162 = vperm.xlu0 %1161, %v352
        %v1163 = vpop.permute.xlu0 %1162
        %v1164 = vlaneseq
        %v1165 = vshrl.u32 %v1164, 7
        %v1166 = vsub.s32 0, %v1165
        %v1167 = vrot.slane %v1163, %v1166
        %vm1168 = vcmp.lt.s32.totalorder %v1111, %v1118
        %vm1169 = vcmp.lt.s32.totalorder %v1111, %v1125
        %vm1170 = vcmp.lt.s32.totalorder %v1111, %v1132
        %vm1171 = vcmp.lt.s32.totalorder %v1111, %v1139
        %vm1172 = vcmp.lt.s32.totalorder %v1111, %v1146
        %vm1173 = vcmp.lt.s32.totalorder %v1111, %v1153
        %vm1174 = vcmp.lt.s32.totalorder %v1111, %v1160
        %vm1175 = vcmp.lt.s32.totalorder %v1111, %v1167
        %v1176 = vsel %vm1168, %v1102, -1e+30
        %v1177 = vsel %vm1169, %v1103, -1e+30
        %v1178 = vsel %vm1170, %v1104, -1e+30
        %v1179 = vsel %vm1171, %v1105, -1e+30
        %v1180 = vsel %vm1172, %v1106, -1e+30
        %v1181 = vsel %vm1173, %v1107, -1e+30
        %v1182 = vsel %vm1174, %v1108, -1e+30
        %v1183 = vsel %vm1175, %v1109, -1e+30
        %vm1184 = vcmask 24576
        %v1185 = vsel %vm1184, %v1176, -inf
        %1186 = vmax.xlane.f32.xlu0 %v1185
        %v1187 = vpop.xlane.xlu0 %1186
        %v1188 = vsel %vm1184, %v1177, -inf
        %1189 = vmax.xlane.f32.xlu0 %v1188
        %v1190 = vpop.xlane.xlu0 %1189
        %v1191 = vsel %vm1184, %v1178, -inf
        %1192 = vmax.xlane.f32.xlu0 %v1191
        %v1193 = vpop.xlane.xlu0 %1192
        %v1194 = vsel %vm1184, %v1179, -inf
        %1195 = vmax.xlane.f32.xlu0 %v1194
        %v1196 = vpop.xlane.xlu0 %1195
        %v1197 = vsel %vm1184, %v1180, -inf
        %1198 = vmax.xlane.f32.xlu0 %v1197
        %v1199 = vpop.xlane.xlu0 %1198
        %v1200 = vsel %vm1184, %v1181, -inf
        %1201 = vmax.xlane.f32.xlu0 %v1200
        %v1202 = vpop.xlane.xlu0 %1201
        %v1203 = vsel %vm1184, %v1182, -inf
        %1204 = vmax.xlane.f32.xlu0 %v1203
        %v1205 = vpop.xlane.xlu0 %1204
        %v1206 = vsel %vm1184, %v1183, -inf
        %1207 = vmax.xlane.f32.xlu0 %v1206
        %v1208 = vpop.xlane.xlu0 %1207
        %v1209 = vsub.f32 %v1176, %v1187
        %v1210 = vsub.f32 %v1177, %v1190
        %v1211 = vsub.f32 %v1178, %v1193
        %v1212 = vsub.f32 %v1179, %v1196
        %v1213 = vsub.f32 %v1180, %v1199
        %v1214 = vsub.f32 %v1181, %v1202
        %v1215 = vsub.f32 %v1182, %v1205
        %v1216 = vsub.f32 %v1183, %v1208
        %v1217 = vmul.f32 %v1209, 1.442695
        %v1218 = vpow.pop %v1217
        %v1219 = vmul.f32 %v1210, 1.442695
        %v1220 = vpow.pop %v1219
        %v1221 = vmul.f32 %v1211, 1.442695
        %v1222 = vpow.pop %v1221
        %v1223 = vmul.f32 %v1212, 1.442695
        %v1224 = vpow.pop %v1223
        %v1225 = vmul.f32 %v1213, 1.442695
        %v1226 = vpow.pop %v1225
        %v1227 = vmul.f32 %v1214, 1.442695
        %v1228 = vpow.pop %v1227
        %v1229 = vmul.f32 %v1215, 1.442695
        %v1230 = vpow.pop %v1229
        %v1231 = vmul.f32 %v1216, 1.442695
        %v1232 = vpow.pop %v1231
        %v1233 = vsel %vm1168, %v1218, 0.0
        %v1234 = vsel %vm1169, %v1220, 0.0
        %v1235 = vsel %vm1170, %v1222, 0.0
        %v1236 = vsel %vm1171, %v1224, 0.0
        %v1237 = vsel %vm1172, %v1226, 0.0
        %v1238 = vsel %vm1173, %v1228, 0.0
        %v1239 = vsel %vm1174, %v1230, 0.0
        %v1240 = vsel %vm1175, %v1232, 0.0
        %v1241 = vsel %vm1184, %v1233, 0.0
        %1242 = vadd.xlane.f32.xlu0 %v1241
        %v1243 = vpop.xlane.xlu0 %1242
        %v1244 = vsel %vm1184, %v1234, 0.0
        %1245 = vadd.xlane.f32.xlu0 %v1244
        %v1246 = vpop.xlane.xlu0 %1245
        %v1247 = vsel %vm1184, %v1235, 0.0
        %1248 = vadd.xlane.f32.xlu0 %v1247
        %v1249 = vpop.xlane.xlu0 %1248
        %v1250 = vsel %vm1184, %v1236, 0.0
        %1251 = vadd.xlane.f32.xlu0 %v1250
        %v1252 = vpop.xlane.xlu0 %1251
        %v1253 = vsel %vm1184, %v1237, 0.0
        %1254 = vadd.xlane.f32.xlu0 %v1253
        %v1255 = vpop.xlane.xlu0 %1254
        %v1256 = vsel %vm1184, %v1238, 0.0
        %1257 = vadd.xlane.f32.xlu0 %v1256
        %v1258 = vpop.xlane.xlu0 %1257
        %v1259 = vsel %vm1184, %v1239, 0.0
        %1260 = vadd.xlane.f32.xlu0 %v1259
        %v1261 = vpop.xlane.xlu0 %1260
        %v1262 = vsel %vm1184, %v1240, 0.0
        %1263 = vadd.xlane.f32.xlu0 %v1262
        %v1264 = vpop.xlane.xlu0 %1263
        %vm1265 = vcmp.gt.f32.partialorder %v1243, 0.0
        %vm1266 = vcmp.gt.f32.partialorder %v1246, 0.0
        %vm1267 = vcmp.gt.f32.partialorder %v1249, 0.0
        %vm1268 = vcmp.gt.f32.partialorder %v1252, 0.0
        %vm1269 = vcmp.gt.f32.partialorder %v1255, 0.0
        %vm1270 = vcmp.gt.f32.partialorder %v1258, 0.0
        %vm1271 = vcmp.gt.f32.partialorder %v1261, 0.0
        %vm1272 = vcmp.gt.f32.partialorder %v1264, 0.0
        %v1273 = vrcp.pop %v1243
        %v1274 = vrcp.pop %v1246
        %v1275 = vrcp.pop %v1249
        %v1276 = vrcp.pop %v1252
        %v1277 = vrcp.pop %v1255
        %v1278 = vrcp.pop %v1258
        %v1279 = vrcp.pop %v1261
        %v1280 = vrcp.pop %v1264
        %v1281 = vsel %vm1265, %v1273, 0.0
        %v1282 = vsel %vm1266, %v1274, 0.0
        %v1283 = vsel %vm1267, %v1275, 0.0
        %v1284 = vsel %vm1268, %v1276, 0.0
        %v1285 = vsel %vm1269, %v1277, 0.0
        %v1286 = vsel %vm1270, %v1278, 0.0
        %v1287 = vsel %vm1271, %v1279, 0.0
        %v1288 = vsel %vm1272, %v1280, 0.0
        %v1289 = vmul.f32 %v1233, %v1281
        %v1290 = vmul.f32 %v1234, %v1282
        %v1291 = vmul.f32 %v1235, %v1283
        %v1292 = vmul.f32 %v1236, %v1284
        %v1293 = vmul.f32 %v1237, %v1285
        %v1294 = vmul.f32 %v1238, %v1286
        %v1295 = vmul.f32 %v1239, %v1287
        %v1296 = vmul.f32 %v1240, %v1288
        %vm1297 = vcmask 31744
        %v1299 = vsel %vm1297, %v1289, 0
        %vm1301 = vcmask 1043456
        %v1302 = vsel %vm1301, %v337, 0
        %1304 = vmatprep.subr.mxu0 0.0
        %1305 = vmatpush1.msra.mxu0 0.0
        %1306 = vmatprep.subr.mxu0 0.0
        %1307 = vmatpush1.msra.mxu0 0.0
        %1308 = vmatprep.subr.mxu0 0.0
        %1309 = vmatpush1.msra.mxu0 0.0
        %1310 = vmatprep.subr.mxu0 0.0
        %1311 = vmatpush1.msra.mxu0 0.0
        %1312 = vmatprep.subr.mxu0 0.0
        %1313 = vmatpush1.msra.mxu0 0.0
        %1314 = vmatprep.subr.mxu0 0.0
        %1315 = vmatpush1.msra.mxu0 0.0
        %1316 = vmatprep.subr.mxu0 0.0
        %1317 = vmatpush1.msra.mxu0 0.0
        %1318 = vmatprep.subr.mxu0 0.0
        %1319 = vmatpush1.msra.mxu0 0.0
        %1320 = vmatprep.subr.mxu0 0.0
        %1321 = vmatpush1.msra.mxu0 0.0
        %1322 = vmatprep.subr.mxu0 0.0
        %1323 = vmatpush1.msra.mxu0 0.0
        %1324 = vmatprep.subr.mxu0 0.0
        %1325 = vmatpush1.msra.mxu0 0.0
        %1326 = vmatprep.subr.mxu0 0.0
        %1327 = vmatpush1.msra.mxu0 0.0
        %1328 = vmatprep.subr.mxu0 0.0
        %1329 = vmatpush1.msra.mxu0 0.0
        %1330 = vmatprep.subr.mxu0 0.0
        %1331 = vmatpush1.msra.mxu0 0.0
        %1332 = vmatprep.subr.mxu0 0.0
        %1333 = vmatpush1.msra.mxu0 0.0
        %1334 = vmatprep.subr.mxu0 0.0
        %1335 = vmatpush1.msra.mxu0 %v1302
        %1336 = vmatprep.subr.mxu0 0.0
        %1337 = vmatpush2.msra.mxu0 0.0
        %1338 = vmatprep.subr.mxu0 0.0
        %1339 = vmatpush2.msra.mxu0 0.0
        %1340 = vmatprep.subr.mxu0 0.0
        %1341 = vmatpush2.msra.mxu0 0.0
        %1342 = vmatprep.subr.mxu0 0.0
        %1343 = vmatpush2.msra.mxu0 0.0
        %1344 = vmatprep.subr.mxu0 0.0
        %1345 = vmatpush2.msra.mxu0 0.0
        %1346 = vmatprep.subr.mxu0 0.0
        %1347 = vmatpush2.msra.mxu0 0.0
        %1348 = vmatprep.subr.mxu0 0.0
        %1349 = vmatpush2.msra.mxu0 0.0
        %1350 = vmatprep.subr.mxu0 0.0
        %1351 = vmatpush2.msra.mxu0 0.0
        %1352 = vmatprep.subr.mxu0 0.0
        %1353 = vmatpush2.msra.mxu0 0.0
        %1354 = vmatprep.subr.mxu0 0.0
        %1355 = vmatpush2.msra.mxu0 0.0
        %1356 = vmatprep.subr.mxu0 0.0
        %1357 = vmatpush2.msra.mxu0 0.0
        %1358 = vmatprep.subr.mxu0 0.0
        %1359 = vmatpush2.msra.mxu0 0.0
        %1360 = vmatprep.subr.mxu0 0.0
        %1361 = vmatpush2.msra.mxu0 0.0
        %1362 = vmatprep.subr.mxu0 0.0
        %1363 = vmatpush2.msra.mxu0 0.0
        %1364 = vmatprep.subr.mxu0 0.0
        %1365 = vmatpush2.msra.mxu0 0.0
        %1366 = vmatprep.subr.mxu0 0.0
        %1367 = vmatpush2.msra.mxu0 0.0
        %1368 = vmatprep.mubr.f32.mxu0 0.0
        %1369 = vmatmul.mubr.f32.gmra.mxu0 %v1299
        %v1370 = vpop.f32.mrf.mxu0
        %v1371 = vadd.f32 0.0, %v1370
        %v1372 = vpop.f32.mrf.mxu0
        %1373 = vdwg.mxu0
        %v1375 = vsel %vm1297, %v1290, 0
        %v1377 = vsel %vm1301, %v338, 0
        %1379 = vmatprep.subr.mxu0 0.0
        %1380 = vmatpush1.msra.mxu0 0.0
        %1381 = vmatprep.subr.mxu0 0.0
        %1382 = vmatpush1.msra.mxu0 0.0
        %1383 = vmatprep.subr.mxu0 0.0
        %1384 = vmatpush1.msra.mxu0 0.0
        %1385 = vmatprep.subr.mxu0 0.0
        %1386 = vmatpush1.msra.mxu0 0.0
        %1387 = vmatprep.subr.mxu0 0.0
        %1388 = vmatpush1.msra.mxu0 0.0
        %1389 = vmatprep.subr.mxu0 0.0
        %1390 = vmatpush1.msra.mxu0 0.0
        %1391 = vmatprep.subr.mxu0 0.0
        %1392 = vmatpush1.msra.mxu0 0.0
        %1393 = vmatprep.subr.mxu0 0.0
        %1394 = vmatpush1.msra.mxu0 0.0
        %1395 = vmatprep.subr.mxu0 0.0
        %1396 = vmatpush1.msra.mxu0 0.0
        %1397 = vmatprep.subr.mxu0 0.0
        %1398 = vmatpush1.msra.mxu0 0.0
        %1399 = vmatprep.subr.mxu0 0.0
        %1400 = vmatpush1.msra.mxu0 0.0
        %1401 = vmatprep.subr.mxu0 0.0
        %1402 = vmatpush1.msra.mxu0 0.0
        %1403 = vmatprep.subr.mxu0 0.0
        %1404 = vmatpush1.msra.mxu0 0.0
        %1405 = vmatprep.subr.mxu0 0.0
        %1406 = vmatpush1.msra.mxu0 0.0
        %1407 = vmatprep.subr.mxu0 0.0
        %1408 = vmatpush1.msra.mxu0 0.0
        %1409 = vmatprep.subr.mxu0 0.0
        %1410 = vmatpush1.msra.mxu0 %v1377
        %1411 = vmatprep.subr.mxu0 0.0
        %1412 = vmatpush2.msra.mxu0 0.0
        %1413 = vmatprep.subr.mxu0 0.0
        %1414 = vmatpush2.msra.mxu0 0.0
        %1415 = vmatprep.subr.mxu0 0.0
        %1416 = vmatpush2.msra.mxu0 0.0
        %1417 = vmatprep.subr.mxu0 0.0
        %1418 = vmatpush2.msra.mxu0 0.0
        %1419 = vmatprep.subr.mxu0 0.0
        %1420 = vmatpush2.msra.mxu0 0.0
        %1421 = vmatprep.subr.mxu0 0.0
        %1422 = vmatpush2.msra.mxu0 0.0
        %1423 = vmatprep.subr.mxu0 0.0
        %1424 = vmatpush2.msra.mxu0 0.0
        %1425 = vmatprep.subr.mxu0 0.0
        %1426 = vmatpush2.msra.mxu0 0.0
        %1427 = vmatprep.subr.mxu0 0.0
        %1428 = vmatpush2.msra.mxu0 0.0
        %1429 = vmatprep.subr.mxu0 0.0
        %1430 = vmatpush2.msra.mxu0 0.0
        %1431 = vmatprep.subr.mxu0 0.0
        %1432 = vmatpush2.msra.mxu0 0.0
        %1433 = vmatprep.subr.mxu0 0.0
        %1434 = vmatpush2.msra.mxu0 0.0
        %1435 = vmatprep.subr.mxu0 0.0
        %1436 = vmatpush2.msra.mxu0 0.0
        %1437 = vmatprep.subr.mxu0 0.0
        %1438 = vmatpush2.msra.mxu0 0.0
        %1439 = vmatprep.subr.mxu0 0.0
        %1440 = vmatpush2.msra.mxu0 0.0
        %1441 = vmatprep.subr.mxu0 0.0
        %1442 = vmatpush2.msra.mxu0 0.0
        %1443 = vmatprep.mubr.f32.mxu0 0.0
        %1444 = vmatmul.mubr.f32.gmra.mxu0 %v1375
        %v1445 = vpop.f32.mrf.mxu0
        %v1446 = vadd.f32 0.0, %v1445
        %v1447 = vpop.f32.mrf.mxu0
        %1448 = vdwg.mxu0
        %v1450 = vsel %vm1297, %v1291, 0
        %v1452 = vsel %vm1301, %v339, 0
        %1454 = vmatprep.subr.mxu0 0.0
        %1455 = vmatpush1.msra.mxu0 0.0
        %1456 = vmatprep.subr.mxu0 0.0
        %1457 = vmatpush1.msra.mxu0 0.0
        %1458 = vmatprep.subr.mxu0 0.0
        %1459 = vmatpush1.msra.mxu0 0.0
        %1460 = vmatprep.subr.mxu0 0.0
        %1461 = vmatpush1.msra.mxu0 0.0
        %1462 = vmatprep.subr.mxu0 0.0
        %1463 = vmatpush1.msra.mxu0 0.0
        %1464 = vmatprep.subr.mxu0 0.0
        %1465 = vmatpush1.msra.mxu0 0.0
        %1466 = vmatprep.subr.mxu0 0.0
        %1467 = vmatpush1.msra.mxu0 0.0
        %1468 = vmatprep.subr.mxu0 0.0
        %1469 = vmatpush1.msra.mxu0 0.0
        %1470 = vmatprep.subr.mxu0 0.0
        %1471 = vmatpush1.msra.mxu0 0.0
        %1472 = vmatprep.subr.mxu0 0.0
        %1473 = vmatpush1.msra.mxu0 0.0
        %1474 = vmatprep.subr.mxu0 0.0
        %1475 = vmatpush1.msra.mxu0 0.0
        %1476 = vmatprep.subr.mxu0 0.0
        %1477 = vmatpush1.msra.mxu0 0.0
        %1478 = vmatprep.subr.mxu0 0.0
        %1479 = vmatpush1.msra.mxu0 0.0
        %1480 = vmatprep.subr.mxu0 0.0
        %1481 = vmatpush1.msra.mxu0 0.0
        %1482 = vmatprep.subr.mxu0 0.0
        %1483 = vmatpush1.msra.mxu0 0.0
        %1484 = vmatprep.subr.mxu0 0.0
        %1485 = vmatpush1.msra.mxu0 %v1452
        %1486 = vmatprep.subr.mxu0 0.0
        %1487 = vmatpush2.msra.mxu0 0.0
        %1488 = vmatprep.subr.mxu0 0.0
        %1489 = vmatpush2.msra.mxu0 0.0
        %1490 = vmatprep.subr.mxu0 0.0
        %1491 = vmatpush2.msra.mxu0 0.0
        %1492 = vmatprep.subr.mxu0 0.0
        %1493 = vmatpush2.msra.mxu0 0.0
        %1494 = vmatprep.subr.mxu0 0.0
        %1495 = vmatpush2.msra.mxu0 0.0
        %1496 = vmatprep.subr.mxu0 0.0
        %1497 = vmatpush2.msra.mxu0 0.0
        %1498 = vmatprep.subr.mxu0 0.0
        %1499 = vmatpush2.msra.mxu0 0.0
        %1500 = vmatprep.subr.mxu0 0.0
        %1501 = vmatpush2.msra.mxu0 0.0
        %1502 = vmatprep.subr.mxu0 0.0
        %1503 = vmatpush2.msra.mxu0 0.0
        %1504 = vmatprep.subr.mxu0 0.0
        %1505 = vmatpush2.msra.mxu0 0.0
        %1506 = vmatprep.subr.mxu0 0.0
        %1507 = vmatpush2.msra.mxu0 0.0
        %1508 = vmatprep.subr.mxu0 0.0
        %1509 = vmatpush2.msra.mxu0 0.0
        %1510 = vmatprep.subr.mxu0 0.0
        %1511 = vmatpush2.msra.mxu0 0.0
        %1512 = vmatprep.subr.mxu0 0.0
        %1513 = vmatpush2.msra.mxu0 0.0
        %1514 = vmatprep.subr.mxu0 0.0
        %1515 = vmatpush2.msra.mxu0 0.0
        %1516 = vmatprep.subr.mxu0 0.0
        %1517 = vmatpush2.msra.mxu0 0.0
        %1518 = vmatprep.mubr.f32.mxu0 0.0
        %1519 = vmatmul.mubr.f32.gmra.mxu0 %v1450
        %v1520 = vpop.f32.mrf.mxu0
        %v1521 = vadd.f32 0.0, %v1520
        %v1522 = vpop.f32.mrf.mxu0
        %1523 = vdwg.mxu0
        %v1525 = vsel %vm1297, %v1292, 0
        %v1527 = vsel %vm1301, %v340, 0
        %1529 = vmatprep.subr.mxu0 0.0
        %1530 = vmatpush1.msra.mxu0 0.0
        %1531 = vmatprep.subr.mxu0 0.0
        %1532 = vmatpush1.msra.mxu0 0.0
        %1533 = vmatprep.subr.mxu0 0.0
        %1534 = vmatpush1.msra.mxu0 0.0
        %1535 = vmatprep.subr.mxu0 0.0
        %1536 = vmatpush1.msra.mxu0 0.0
        %1537 = vmatprep.subr.mxu0 0.0
        %1538 = vmatpush1.msra.mxu0 0.0
        %1539 = vmatprep.subr.mxu0 0.0
        %1540 = vmatpush1.msra.mxu0 0.0
        %1541 = vmatprep.subr.mxu0 0.0
        %1542 = vmatpush1.msra.mxu0 0.0
        %1543 = vmatprep.subr.mxu0 0.0
        %1544 = vmatpush1.msra.mxu0 0.0
        %1545 = vmatprep.subr.mxu0 0.0
        %1546 = vmatpush1.msra.mxu0 0.0
        %1547 = vmatprep.subr.mxu0 0.0
        %1548 = vmatpush1.msra.mxu0 0.0
        %1549 = vmatprep.subr.mxu0 0.0
        %1550 = vmatpush1.msra.mxu0 0.0
        %1551 = vmatprep.subr.mxu0 0.0
        %1552 = vmatpush1.msra.mxu0 0.0
        %1553 = vmatprep.subr.mxu0 0.0
        %1554 = vmatpush1.msra.mxu0 0.0
        %1555 = vmatprep.subr.mxu0 0.0
        %1556 = vmatpush1.msra.mxu0 0.0
        %1557 = vmatprep.subr.mxu0 0.0
        %1558 = vmatpush1.msra.mxu0 0.0
        %1559 = vmatprep.subr.mxu0 0.0
        %1560 = vmatpush1.msra.mxu0 %v1527
        %1561 = vmatprep.subr.mxu0 0.0
        %1562 = vmatpush2.msra.mxu0 0.0
        %1563 = vmatprep.subr.mxu0 0.0
        %1564 = vmatpush2.msra.mxu0 0.0
        %1565 = vmatprep.subr.mxu0 0.0
        %1566 = vmatpush2.msra.mxu0 0.0
        %1567 = vmatprep.subr.mxu0 0.0
        %1568 = vmatpush2.msra.mxu0 0.0
        %1569 = vmatprep.subr.mxu0 0.0
        %1570 = vmatpush2.msra.mxu0 0.0
        %1571 = vmatprep.subr.mxu0 0.0
        %1572 = vmatpush2.msra.mxu0 0.0
        %1573 = vmatprep.subr.mxu0 0.0
        %1574 = vmatpush2.msra.mxu0 0.0
        %1575 = vmatprep.subr.mxu0 0.0
        %1576 = vmatpush2.msra.mxu0 0.0
        %1577 = vmatprep.subr.mxu0 0.0
        %1578 = vmatpush2.msra.mxu0 0.0
        %1579 = vmatprep.subr.mxu0 0.0
        %1580 = vmatpush2.msra.mxu0 0.0
        %1581 = vmatprep.subr.mxu0 0.0
        %1582 = vmatpush2.msra.mxu0 0.0
        %1583 = vmatprep.subr.mxu0 0.0
        %1584 = vmatpush2.msra.mxu0 0.0
        %1585 = vmatprep.subr.mxu0 0.0
        %1586 = vmatpush2.msra.mxu0 0.0
        %1587 = vmatprep.subr.mxu0 0.0
        %1588 = vmatpush2.msra.mxu0 0.0
        %1589 = vmatprep.subr.mxu0 0.0
        %1590 = vmatpush2.msra.mxu0 0.0
        %1591 = vmatprep.subr.mxu0 0.0
        %1592 = vmatpush2.msra.mxu0 0.0
        %1593 = vmatprep.mubr.f32.mxu0 0.0
        %1594 = vmatmul.mubr.f32.gmra.mxu0 %v1525
        %v1595 = vpop.f32.mrf.mxu0
        %v1596 = vadd.f32 0.0, %v1595
        %v1597 = vpop.f32.mrf.mxu0
        %1598 = vdwg.mxu0
        %v1600 = vsel %vm1297, %v1293, 0
        %v1602 = vsel %vm1301, %v341, 0
        %1604 = vmatprep.subr.mxu0 0.0
        %1605 = vmatpush1.msra.mxu0 0.0
        %1606 = vmatprep.subr.mxu0 0.0
        %1607 = vmatpush1.msra.mxu0 0.0
        %1608 = vmatprep.subr.mxu0 0.0
        %1609 = vmatpush1.msra.mxu0 0.0
        %1610 = vmatprep.subr.mxu0 0.0
        %1611 = vmatpush1.msra.mxu0 0.0
        %1612 = vmatprep.subr.mxu0 0.0
        %1613 = vmatpush1.msra.mxu0 0.0
        %1614 = vmatprep.subr.mxu0 0.0
        %1615 = vmatpush1.msra.mxu0 0.0
        %1616 = vmatprep.subr.mxu0 0.0
        %1617 = vmatpush1.msra.mxu0 0.0
        %1618 = vmatprep.subr.mxu0 0.0
        %1619 = vmatpush1.msra.mxu0 0.0
        %1620 = vmatprep.subr.mxu0 0.0
        %1621 = vmatpush1.msra.mxu0 0.0
        %1622 = vmatprep.subr.mxu0 0.0
        %1623 = vmatpush1.msra.mxu0 0.0
        %1624 = vmatprep.subr.mxu0 0.0
        %1625 = vmatpush1.msra.mxu0 0.0
        %1626 = vmatprep.subr.mxu0 0.0
        %1627 = vmatpush1.msra.mxu0 0.0
        %1628 = vmatprep.subr.mxu0 0.0
        %1629 = vmatpush1.msra.mxu0 0.0
        %1630 = vmatprep.subr.mxu0 0.0
        %1631 = vmatpush1.msra.mxu0 0.0
        %1632 = vmatprep.subr.mxu0 0.0
        %1633 = vmatpush1.msra.mxu0 0.0
        %1634 = vmatprep.subr.mxu0 0.0
        %1635 = vmatpush1.msra.mxu0 %v1602
        %1636 = vmatprep.subr.mxu0 0.0
        %1637 = vmatpush2.msra.mxu0 0.0
        %1638 = vmatprep.subr.mxu0 0.0
        %1639 = vmatpush2.msra.mxu0 0.0
        %1640 = vmatprep.subr.mxu0 0.0
        %1641 = vmatpush2.msra.mxu0 0.0
        %1642 = vmatprep.subr.mxu0 0.0
        %1643 = vmatpush2.msra.mxu0 0.0
        %1644 = vmatprep.subr.mxu0 0.0
        %1645 = vmatpush2.msra.mxu0 0.0
        %1646 = vmatprep.subr.mxu0 0.0
        %1647 = vmatpush2.msra.mxu0 0.0
        %1648 = vmatprep.subr.mxu0 0.0
        %1649 = vmatpush2.msra.mxu0 0.0
        %1650 = vmatprep.subr.mxu0 0.0
        %1651 = vmatpush2.msra.mxu0 0.0
        %1652 = vmatprep.subr.mxu0 0.0
        %1653 = vmatpush2.msra.mxu0 0.0
        %1654 = vmatprep.subr.mxu0 0.0
        %1655 = vmatpush2.msra.mxu0 0.0
        %1656 = vmatprep.subr.mxu0 0.0
        %1657 = vmatpush2.msra.mxu0 0.0
        %1658 = vmatprep.subr.mxu0 0.0
        %1659 = vmatpush2.msra.mxu0 0.0
        %1660 = vmatprep.subr.mxu0 0.0
        %1661 = vmatpush2.msra.mxu0 0.0
        %1662 = vmatprep.subr.mxu0 0.0
        %1663 = vmatpush2.msra.mxu0 0.0
        %1664 = vmatprep.subr.mxu0 0.0
        %1665 = vmatpush2.msra.mxu0 0.0
        %1666 = vmatprep.subr.mxu0 0.0
        %1667 = vmatpush2.msra.mxu0 0.0
        %1668 = vmatprep.mubr.f32.mxu0 0.0
        %1669 = vmatmul.mubr.f32.gmra.mxu0 %v1600
        %v1670 = vpop.f32.mrf.mxu0
        %v1671 = vadd.f32 0.0, %v1670
        %v1672 = vpop.f32.mrf.mxu0
        %1673 = vdwg.mxu0
        %v1675 = vsel %vm1297, %v1294, 0
        %v1677 = vsel %vm1301, %v342, 0
        %1679 = vmatprep.subr.mxu0 0.0
        %1680 = vmatpush1.msra.mxu0 0.0
        %1681 = vmatprep.subr.mxu0 0.0
        %1682 = vmatpush1.msra.mxu0 0.0
        %1683 = vmatprep.subr.mxu0 0.0
        %1684 = vmatpush1.msra.mxu0 0.0
        %1685 = vmatprep.subr.mxu0 0.0
        %1686 = vmatpush1.msra.mxu0 0.0
        %1687 = vmatprep.subr.mxu0 0.0
        %1688 = vmatpush1.msra.mxu0 0.0
        %1689 = vmatprep.subr.mxu0 0.0
        %1690 = vmatpush1.msra.mxu0 0.0
        %1691 = vmatprep.subr.mxu0 0.0
        %1692 = vmatpush1.msra.mxu0 0.0
        %1693 = vmatprep.subr.mxu0 0.0
        %1694 = vmatpush1.msra.mxu0 0.0
        %1695 = vmatprep.subr.mxu0 0.0
        %1696 = vmatpush1.msra.mxu0 0.0
        %1697 = vmatprep.subr.mxu0 0.0
        %1698 = vmatpush1.msra.mxu0 0.0
        %1699 = vmatprep.subr.mxu0 0.0
        %1700 = vmatpush1.msra.mxu0 0.0
        %1701 = vmatprep.subr.mxu0 0.0
        %1702 = vmatpush1.msra.mxu0 0.0
        %1703 = vmatprep.subr.mxu0 0.0
        %1704 = vmatpush1.msra.mxu0 0.0
        %1705 = vmatprep.subr.mxu0 0.0
        %1706 = vmatpush1.msra.mxu0 0.0
        %1707 = vmatprep.subr.mxu0 0.0
        %1708 = vmatpush1.msra.mxu0 0.0
        %1709 = vmatprep.subr.mxu0 0.0
        %1710 = vmatpush1.msra.mxu0 %v1677
        %1711 = vmatprep.subr.mxu0 0.0
        %1712 = vmatpush2.msra.mxu0 0.0
        %1713 = vmatprep.subr.mxu0 0.0
        %1714 = vmatpush2.msra.mxu0 0.0
        %1715 = vmatprep.subr.mxu0 0.0
        %1716 = vmatpush2.msra.mxu0 0.0
        %1717 = vmatprep.subr.mxu0 0.0
        %1718 = vmatpush2.msra.mxu0 0.0
        %1719 = vmatprep.subr.mxu0 0.0
        %1720 = vmatpush2.msra.mxu0 0.0
        %1721 = vmatprep.subr.mxu0 0.0
        %1722 = vmatpush2.msra.mxu0 0.0
        %1723 = vmatprep.subr.mxu0 0.0
        %1724 = vmatpush2.msra.mxu0 0.0
        %1725 = vmatprep.subr.mxu0 0.0
        %1726 = vmatpush2.msra.mxu0 0.0
        %1727 = vmatprep.subr.mxu0 0.0
        %1728 = vmatpush2.msra.mxu0 0.0
        %1729 = vmatprep.subr.mxu0 0.0
        %1730 = vmatpush2.msra.mxu0 0.0
        %1731 = vmatprep.subr.mxu0 0.0
        %1732 = vmatpush2.msra.mxu0 0.0
        %1733 = vmatprep.subr.mxu0 0.0
        %1734 = vmatpush2.msra.mxu0 0.0
        %1735 = vmatprep.subr.mxu0 0.0
        %1736 = vmatpush2.msra.mxu0 0.0
        %1737 = vmatprep.subr.mxu0 0.0
        %1738 = vmatpush2.msra.mxu0 0.0
        %1739 = vmatprep.subr.mxu0 0.0
        %1740 = vmatpush2.msra.mxu0 0.0
        %1741 = vmatprep.subr.mxu0 0.0
        %1742 = vmatpush2.msra.mxu0 0.0
        %1743 = vmatprep.mubr.f32.mxu0 0.0
        %1744 = vmatmul.mubr.f32.gmra.mxu0 %v1675
        %v1745 = vpop.f32.mrf.mxu0
        %v1746 = vadd.f32 0.0, %v1745
        %v1747 = vpop.f32.mrf.mxu0
        %1748 = vdwg.mxu0
        %v1750 = vsel %vm1297, %v1295, 0
        %v1752 = vsel %vm1301, %v343, 0
        %1754 = vmatprep.subr.mxu0 0.0
        %1755 = vmatpush1.msra.mxu0 0.0
        %1756 = vmatprep.subr.mxu0 0.0
        %1757 = vmatpush1.msra.mxu0 0.0
        %1758 = vmatprep.subr.mxu0 0.0
        %1759 = vmatpush1.msra.mxu0 0.0
        %1760 = vmatprep.subr.mxu0 0.0
        %1761 = vmatpush1.msra.mxu0 0.0
        %1762 = vmatprep.subr.mxu0 0.0
        %1763 = vmatpush1.msra.mxu0 0.0
        %1764 = vmatprep.subr.mxu0 0.0
        %1765 = vmatpush1.msra.mxu0 0.0
        %1766 = vmatprep.subr.mxu0 0.0
        %1767 = vmatpush1.msra.mxu0 0.0
        %1768 = vmatprep.subr.mxu0 0.0
        %1769 = vmatpush1.msra.mxu0 0.0
        %1770 = vmatprep.subr.mxu0 0.0
        %1771 = vmatpush1.msra.mxu0 0.0
        %1772 = vmatprep.subr.mxu0 0.0
        %1773 = vmatpush1.msra.mxu0 0.0
        %1774 = vmatprep.subr.mxu0 0.0
        %1775 = vmatpush1.msra.mxu0 0.0
        %1776 = vmatprep.subr.mxu0 0.0
        %1777 = vmatpush1.msra.mxu0 0.0
        %1778 = vmatprep.subr.mxu0 0.0
        %1779 = vmatpush1.msra.mxu0 0.0
        %1780 = vmatprep.subr.mxu0 0.0
        %1781 = vmatpush1.msra.mxu0 0.0
        %1782 = vmatprep.subr.mxu0 0.0
        %1783 = vmatpush1.msra.mxu0 0.0
        %1784 = vmatprep.subr.mxu0 0.0
        %1785 = vmatpush1.msra.mxu0 %v1752
        %1786 = vmatprep.subr.mxu0 0.0
        %1787 = vmatpush2.msra.mxu0 0.0
        %1788 = vmatprep.subr.mxu0 0.0
        %1789 = vmatpush2.msra.mxu0 0.0
        %1790 = vmatprep.subr.mxu0 0.0
        %1791 = vmatpush2.msra.mxu0 0.0
        %1792 = vmatprep.subr.mxu0 0.0
        %1793 = vmatpush2.msra.mxu0 0.0
        %1794 = vmatprep.subr.mxu0 0.0
        %1795 = vmatpush2.msra.mxu0 0.0
        %1796 = vmatprep.subr.mxu0 0.0
        %1797 = vmatpush2.msra.mxu0 0.0
        %1798 = vmatprep.subr.mxu0 0.0
        %1799 = vmatpush2.msra.mxu0 0.0
        %1800 = vmatprep.subr.mxu0 0.0
        %1801 = vmatpush2.msra.mxu0 0.0
        %1802 = vmatprep.subr.mxu0 0.0
        %1803 = vmatpush2.msra.mxu0 0.0
        %1804 = vmatprep.subr.mxu0 0.0
        %1805 = vmatpush2.msra.mxu0 0.0
        %1806 = vmatprep.subr.mxu0 0.0
        %1807 = vmatpush2.msra.mxu0 0.0
        %1808 = vmatprep.subr.mxu0 0.0
        %1809 = vmatpush2.msra.mxu0 0.0
        %1810 = vmatprep.subr.mxu0 0.0
        %1811 = vmatpush2.msra.mxu0 0.0
        %1812 = vmatprep.subr.mxu0 0.0
        %1813 = vmatpush2.msra.mxu0 0.0
        %1814 = vmatprep.subr.mxu0 0.0
        %1815 = vmatpush2.msra.mxu0 0.0
        %1816 = vmatprep.subr.mxu0 0.0
        %1817 = vmatpush2.msra.mxu0 0.0
        %1818 = vmatprep.mubr.f32.mxu0 0.0
        %1819 = vmatmul.mubr.f32.gmra.mxu0 %v1750
        %v1820 = vpop.f32.mrf.mxu0
        %v1821 = vadd.f32 0.0, %v1820
        %v1822 = vpop.f32.mrf.mxu0
        %1823 = vdwg.mxu0
        %v1825 = vsel %vm1297, %v1296, 0
        %v1827 = vsel %vm1301, %v344, 0
        %1829 = vmatprep.subr.mxu0 0.0
        %1830 = vmatpush1.msra.mxu0 0.0
        %1831 = vmatprep.subr.mxu0 0.0
        %1832 = vmatpush1.msra.mxu0 0.0
        %1833 = vmatprep.subr.mxu0 0.0
        %1834 = vmatpush1.msra.mxu0 0.0
        %1835 = vmatprep.subr.mxu0 0.0
        %1836 = vmatpush1.msra.mxu0 0.0
        %1837 = vmatprep.subr.mxu0 0.0
        %1838 = vmatpush1.msra.mxu0 0.0
        %1839 = vmatprep.subr.mxu0 0.0
        %1840 = vmatpush1.msra.mxu0 0.0
        %1841 = vmatprep.subr.mxu0 0.0
        %1842 = vmatpush1.msra.mxu0 0.0
        %1843 = vmatprep.subr.mxu0 0.0
        %1844 = vmatpush1.msra.mxu0 0.0
        %1845 = vmatprep.subr.mxu0 0.0
        %1846 = vmatpush1.msra.mxu0 0.0
        %1847 = vmatprep.subr.mxu0 0.0
        %1848 = vmatpush1.msra.mxu0 0.0
        %1849 = vmatprep.subr.mxu0 0.0
        %1850 = vmatpush1.msra.mxu0 0.0
        %1851 = vmatprep.subr.mxu0 0.0
        %1852 = vmatpush1.msra.mxu0 0.0
        %1853 = vmatprep.subr.mxu0 0.0
        %1854 = vmatpush1.msra.mxu0 0.0
        %1855 = vmatprep.subr.mxu0 0.0
        %1856 = vmatpush1.msra.mxu0 0.0
        %1857 = vmatprep.subr.mxu0 0.0
        %1858 = vmatpush1.msra.mxu0 0.0
        %1859 = vmatprep.subr.mxu0 0.0
        %1860 = vmatpush1.msra.mxu0 %v1827
        %1861 = vmatprep.subr.mxu0 0.0
        %1862 = vmatpush2.msra.mxu0 0.0
        %1863 = vmatprep.subr.mxu0 0.0
        %1864 = vmatpush2.msra.mxu0 0.0
        %1865 = vmatprep.subr.mxu0 0.0
        %1866 = vmatpush2.msra.mxu0 0.0
        %1867 = vmatprep.subr.mxu0 0.0
        %1868 = vmatpush2.msra.mxu0 0.0
        %1869 = vmatprep.subr.mxu0 0.0
        %1870 = vmatpush2.msra.mxu0 0.0
        %1871 = vmatprep.subr.mxu0 0.0
        %1872 = vmatpush2.msra.mxu0 0.0
        %1873 = vmatprep.subr.mxu0 0.0
        %1874 = vmatpush2.msra.mxu0 0.0
        %1875 = vmatprep.subr.mxu0 0.0
        %1876 = vmatpush2.msra.mxu0 0.0
        %1877 = vmatprep.subr.mxu0 0.0
        %1878 = vmatpush2.msra.mxu0 0.0
        %1879 = vmatprep.subr.mxu0 0.0
        %1880 = vmatpush2.msra.mxu0 0.0
        %1881 = vmatprep.subr.mxu0 0.0
        %1882 = vmatpush2.msra.mxu0 0.0
        %1883 = vmatprep.subr.mxu0 0.0
        %1884 = vmatpush2.msra.mxu0 0.0
        %1885 = vmatprep.subr.mxu0 0.0
        %1886 = vmatpush2.msra.mxu0 0.0
        %1887 = vmatprep.subr.mxu0 0.0
        %1888 = vmatpush2.msra.mxu0 0.0
        %1889 = vmatprep.subr.mxu0 0.0
        %1890 = vmatpush2.msra.mxu0 0.0
        %1891 = vmatprep.subr.mxu0 0.0
        %1892 = vmatpush2.msra.mxu0 0.0
        %1893 = vmatprep.mubr.f32.mxu0 0.0
        %1894 = vmatmul.mubr.f32.gmra.mxu0 %v1825
        %v1895 = vpop.f32.mrf.mxu0
        %v1896 = vadd.f32 0.0, %v1895
        %v1897 = vpop.f32.mrf.mxu0
        %1898 = vdwg.mxu0
        %vm1899 = vcmask 253952
        %1900 = vst.msk [vmem:[%s324] sm:$0x1] %vm1899, %v1371
        %1901 = vst.msk [vmem:[%s324 + $0x1] sm:$0x1] %vm1899, %v1446
        %1902 = vst.msk [vmem:[%s324 + $0x2] sm:$0x1] %vm1899, %v1521
        %1903 = vst.msk [vmem:[%s324 + $0x3] sm:$0x1] %vm1899, %v1596
        %1904 = vst.msk [vmem:[%s324 + $0x4] sm:$0x1] %vm1899, %v1671
        %1905 = vst.msk [vmem:[%s324 + $0x5] sm:$0x1] %vm1899, %v1746
        %1906 = vst.msk [vmem:[%s324 + $0x6] sm:$0x1] %vm1899, %v1821
        %1907 = vst.msk [vmem:[%s324 + $0x7] sm:$0x1] %vm1899, %v1896
        %vm1908 = vcmp.gt.s32.totalorder %v345, 0
        %vm1909 = vcmp.gt.s32.totalorder %v346, 0
        %vm1910 = vcmp.gt.s32.totalorder %v347, 0
        %vm1911 = vcmp.gt.s32.totalorder %v348, 0
        %vm1912 = vcmp.gt.s32.totalorder %v349, 0
        %vm1913 = vcmp.gt.s32.totalorder %v350, 0
        %vm1914 = vcmp.gt.s32.totalorder %v351, 0
        %vm1915 = vcmp.gt.s32.totalorder %v352, 0
        %v1916 = vsel %vm1908, 1, 0
        %v1917 = vsel %vm1909, 1, 0
        %v1918 = vsel %vm1910, 1, 0
        %v1919 = vsel %vm1911, 1, 0
        %v1920 = vsel %vm1912, 1, 0
        %v1921 = vsel %vm1913, 1, 0
        %v1922 = vsel %vm1914, 1, 0
        %v1923 = vsel %vm1915, 1, 0
        %v1924 = vcvt.s32.f32 %v1916
        %v1925 = vcvt.s32.f32 %v1917
        %v1926 = vcvt.s32.f32 %v1918
        %v1927 = vcvt.s32.f32 %v1919
        %v1928 = vcvt.s32.f32 %v1920
        %v1929 = vcvt.s32.f32 %v1921
        %v1930 = vcvt.s32.f32 %v1922
        %v1931 = vcvt.s32.f32 %v1923
        %1932 = vset.pattern.permute.xlu0 0
        %1933 = vperm.xlu0 %1932, %v353
        %v1934 = vpop.permute.xlu0 %1933
        %v1935 = vlaneseq
        %v1936 = vshrl.u32 %v1935, 7
        %v1937 = vsub.s32 0, %v1936
        %v1938 = vrot.slane %v1934, %v1937
        %1939 = vset.pattern.permute.xlu0 0
        %1940 = vperm.xlu0 %1939, %v354
        %v1941 = vpop.permute.xlu0 %1940
        %v1942 = vlaneseq
        %v1943 = vshrl.u32 %v1942, 7
        %v1944 = vsub.s32 0, %v1943
        %v1945 = vrot.slane %v1941, %v1944
        %1946 = vset.pattern.permute.xlu0 0
        %1947 = vperm.xlu0 %1946, %v355
        %v1948 = vpop.permute.xlu0 %1947
        %v1949 = vlaneseq
        %v1950 = vshrl.u32 %v1949, 7
        %v1951 = vsub.s32 0, %v1950
        %v1952 = vrot.slane %v1948, %v1951
        %1953 = vset.pattern.permute.xlu0 0
        %1954 = vperm.xlu0 %1953, %v356
        %v1955 = vpop.permute.xlu0 %1954
        %v1956 = vlaneseq
        %v1957 = vshrl.u32 %v1956, 7
        %v1958 = vsub.s32 0, %v1957
        %v1959 = vrot.slane %v1955, %v1958
        %1960 = vset.pattern.permute.xlu0 0
        %1961 = vperm.xlu0 %1960, %v357
        %v1962 = vpop.permute.xlu0 %1961
        %v1963 = vlaneseq
        %v1964 = vshrl.u32 %v1963, 7
        %v1965 = vsub.s32 0, %v1964
        %v1966 = vrot.slane %v1962, %v1965
        %1967 = vset.pattern.permute.xlu0 0
        %1968 = vperm.xlu0 %1967, %v358
        %v1969 = vpop.permute.xlu0 %1968
        %v1970 = vlaneseq
        %v1971 = vshrl.u32 %v1970, 7
        %v1972 = vsub.s32 0, %v1971
        %v1973 = vrot.slane %v1969, %v1972
        %1974 = vset.pattern.permute.xlu0 0
        %1975 = vperm.xlu0 %1974, %v359
        %v1976 = vpop.permute.xlu0 %1975
        %v1977 = vlaneseq
        %v1978 = vshrl.u32 %v1977, 7
        %v1979 = vsub.s32 0, %v1978
        %v1980 = vrot.slane %v1976, %v1979
        %1981 = vset.pattern.permute.xlu0 0
        %1982 = vperm.xlu0 %1981, %v360
        %v1983 = vpop.permute.xlu0 %1982
        %v1984 = vlaneseq
        %v1985 = vshrl.u32 %v1984, 7
        %v1986 = vsub.s32 0, %v1985
        %v1987 = vrot.slane %v1983, %v1986
        %vm1988 = vcmp.eq.s32.totalorder %v1111, %v1938
        %vm1989 = vcmp.eq.s32.totalorder %v1111, %v1945
        %vm1990 = vcmp.eq.s32.totalorder %v1111, %v1952
        %vm1991 = vcmp.eq.s32.totalorder %v1111, %v1959
        %vm1992 = vcmp.eq.s32.totalorder %v1111, %v1966
        %vm1993 = vcmp.eq.s32.totalorder %v1111, %v1973
        %vm1994 = vcmp.eq.s32.totalorder %v1111, %v1980
        %vm1995 = vcmp.eq.s32.totalorder %v1111, %v1987
        %v1996 = vsel %vm1988, 1, 0
        %v1997 = vsel %vm1989, 1, 0
        %v1998 = vsel %vm1990, 1, 0
        %v1999 = vsel %vm1991, 1, 0
        %v2000 = vsel %vm1992, 1, 0
        %v2001 = vsel %vm1993, 1, 0
        %v2002 = vsel %vm1994, 1, 0
        %v2003 = vsel %vm1995, 1, 0
        %v2004 = vcvt.s32.f32 %v1996
        %v2005 = vcvt.s32.f32 %v1997
        %v2006 = vcvt.s32.f32 %v1998
        %v2007 = vcvt.s32.f32 %v1999
        %v2008 = vcvt.s32.f32 %v2000
        %v2009 = vcvt.s32.f32 %v2001
        %v2010 = vcvt.s32.f32 %v2002
        %v2011 = vcvt.s32.f32 %v2003
        %2013 = vset.pattern.permute.xlu0 0
        %2014 = vperm.xlu0 %2013, %v1924
        %v2015 = vpop.permute.xlu0 %2014
        %v2017 = vlaneseq
        %v2018 = vshrl.u32 %v2017, 7
        %v2019 = vsub.s32 0, %v2018
        %v2020 = vrot.slane %v2015, %v2019
        %2022 = vset.pattern.permute.xlu0 0
        %2023 = vperm.xlu0 %2022, %v1925
        %v2024 = vpop.permute.xlu0 %2023
        %v2026 = vlaneseq
        %v2027 = vshrl.u32 %v2026, 7
        %v2028 = vsub.s32 0, %v2027
        %v2029 = vrot.slane %v2024, %v2028
        %2031 = vset.pattern.permute.xlu0 0
        %2032 = vperm.xlu0 %2031, %v1926
        %v2033 = vpop.permute.xlu0 %2032
        %v2035 = vlaneseq
        %v2036 = vshrl.u32 %v2035, 7
        %v2037 = vsub.s32 0, %v2036
        %v2038 = vrot.slane %v2033, %v2037
        %2040 = vset.pattern.permute.xlu0 0
        %2041 = vperm.xlu0 %2040, %v1927
        %v2042 = vpop.permute.xlu0 %2041
        %v2044 = vlaneseq
        %v2045 = vshrl.u32 %v2044, 7
        %v2046 = vsub.s32 0, %v2045
        %v2047 = vrot.slane %v2042, %v2046
        %2049 = vset.pattern.permute.xlu0 0
        %2050 = vperm.xlu0 %2049, %v1928
        %v2051 = vpop.permute.xlu0 %2050
        %v2053 = vlaneseq
        %v2054 = vshrl.u32 %v2053, 7
        %v2055 = vsub.s32 0, %v2054
        %v2056 = vrot.slane %v2051, %v2055
        %2058 = vset.pattern.permute.xlu0 0
        %2059 = vperm.xlu0 %2058, %v1929
        %v2060 = vpop.permute.xlu0 %2059
        %v2062 = vlaneseq
        %v2063 = vshrl.u32 %v2062, 7
        %v2064 = vsub.s32 0, %v2063
        %v2065 = vrot.slane %v2060, %v2064
        %2067 = vset.pattern.permute.xlu0 0
        %2068 = vperm.xlu0 %2067, %v1930
        %v2069 = vpop.permute.xlu0 %2068
        %v2071 = vlaneseq
        %v2072 = vshrl.u32 %v2071, 7
        %v2073 = vsub.s32 0, %v2072
        %v2074 = vrot.slane %v2069, %v2073
        %2076 = vset.pattern.permute.xlu0 0
        %2077 = vperm.xlu0 %2076, %v1931
        %v2078 = vpop.permute.xlu0 %2077
        %v2080 = vlaneseq
        %v2081 = vshrl.u32 %v2080, 7
        %v2082 = vsub.s32 0, %v2081
        %v2083 = vrot.slane %v2078, %v2082
        %v2084 = vmul.f32 %v2004, %v2020
        %v2085 = vmul.f32 %v2005, %v2029
        %v2086 = vmul.f32 %v2006, %v2038
        %v2087 = vmul.f32 %v2007, %v2047
        %v2088 = vmul.f32 %v2008, %v2056
        %v2089 = vmul.f32 %v2009, %v2065
        %v2090 = vmul.f32 %v2010, %v2074
        %v2091 = vmul.f32 %v2011, %v2083
        %2100 = vrot.lane.b32.xlu0 %v2084, 32
        %v2101 = vpop.permute.xlu0 %2100
        %2102 = vrot.lane.b32.xlu0 %v2085, 32
        %v2103 = vpop.permute.xlu0 %2102
        %2104 = vrot.lane.b32.xlu0 %v2086, 32
        %v2105 = vpop.permute.xlu0 %2104
        %2106 = vrot.lane.b32.xlu0 %v2087, 32
        %v2107 = vpop.permute.xlu0 %2106
        %2108 = vrot.lane.b32.xlu0 %v2088, 32
        %v2109 = vpop.permute.xlu0 %2108
        %2110 = vrot.lane.b32.xlu0 %v2089, 32
        %v2111 = vpop.permute.xlu0 %2110
        %2112 = vrot.lane.b32.xlu0 %v2090, 32
        %v2113 = vpop.permute.xlu0 %2112
        %2114 = vrot.lane.b32.xlu0 %v2091, 32
        %v2115 = vpop.permute.xlu0 %2114
        %vm2124 = vcmask 385280
        %2125 = vst.msk [vmem:[%s324] sm:$0x1] %vm2124, %v2101
        %2126 = vst.msk [vmem:[%s324 + $0x1] sm:$0x1] %vm2124, %v2103
        %2127 = vst.msk [vmem:[%s324 + $0x2] sm:$0x1] %vm2124, %v2105
        %2128 = vst.msk [vmem:[%s324 + $0x3] sm:$0x1] %vm2124, %v2107
        %2129 = vst.msk [vmem:[%s324 + $0x4] sm:$0x1] %vm2124, %v2109
        %2130 = vst.msk [vmem:[%s324 + $0x5] sm:$0x1] %vm2124, %v2111
        %2131 = vst.msk [vmem:[%s324 + $0x6] sm:$0x1] %vm2124, %v2113
        %2132 = vst.msk [vmem:[%s324 + $0x7] sm:$0x1] %vm2124, %v2115
        %s2133 = sand.u32 %s194, 1
        %s2134 = scalar_lea.sflag [#allocation4], %s2133
        %s2135 = sand.u32 %s194, 1
        %s2136 = smul.addr %s2135, 8
        %s2137 = scalar_lea.vmem [#allocation5], %s2136
        // Predicated region
        $region53: #{tpu_custom_call.1} parent=47 // pred_check
          %p2138 = pneg %p204
        $region54: #{tpu_custom_call.1} parent=47 // pred_check_branch
          %2140 = sbr.rel (%p2138) target = $region56
        $region55: #{tpu_custom_call.1} parent=47 // pred_region
          %s2141 = smul.u32 8, %s24
          %s2143 = ssub.s32 128, 128
          %2144 = vsyncadd %s2134, %s2143
          %s2145 = smul.addr %s2141, 16
          %s2146 = scalar_lea.hbm %s7, %s2145
          %s2147 = sshll.u32 %s2137, 4
          %s2148 = int_to_ptr.vmem [resolvable:$true] %s2147
          %2153 = dma.vmem_to_hbm [thread:$0]  %s2148, 128, %s2146, %s2134, 16, 16, 1
        $region56: #{tpu_custom_call.1} parent=47 // pred_fallthru
          _
      $region48: #{tpu_custom_call.1} parent=5 // pred_fallthru
        _
      %p2154 = scmp.le.s32.totalorder 2, %s19
      // Predicated region
      $region57: #{tpu_custom_call.1} parent=5 // pred_check
        %p2155 = pneg %p2154
      $region58: #{tpu_custom_call.1} parent=5 // pred_check_branch
        %2157 = sbr.rel (%p2155) target = $region60
      $region59: #{tpu_custom_call.1} parent=5 // pred_region
        %s2158 = ssub.s32 %s19, 2
        // Predicated region
        $region61: #{tpu_custom_call.1} parent=59 // pred_check
          %p2159 = pneg %p210
        $region62: #{tpu_custom_call.1} parent=59 // pred_check_branch
          %2161 = sbr.rel (%p2159) target = $region64
        $region63: #{tpu_custom_call.1} parent=59 // pred_region
          %s2162 = sand.u32 %s195, 1
          %s2163 = scalar_lea.sflag [#allocation4], %s2162
          %s2164 = sand.u32 %s195, 1
          %s2165 = smul.addr %s2164, 8
          %s2166 = scalar_lea.vmem [#allocation5], %s2165
          %2167 = dma.done %s2163, 128
        $region64: #{tpu_custom_call.1} parent=59 // pred_fallthru
          _
      $region60: #{tpu_custom_call.1} parent=5 // pred_fallthru
        _
    $region6: #{tpu_custom_call.1} parent=1 // loop_footer
      %s23 = sadd.s32 1, %s19
    $region7: #{tpu_custom_call.1} parent=1 // loop_footer_branch
      %18 = sbr.rel target = $region3
    $region8: #{tpu_custom_call.1} parent=1 // loop_exit
      _
    %2168 = vsyncpa [#allocation3], 1
    %s2169 = scalar_lea.sflag [#allocation3], 1
    %2170 = vsyncpa %s2169, 1
    %2171 = vsyncpa [#allocation4], 1
    %s2172 = scalar_lea.sflag [#allocation4], 1
    %2173 = vsyncpa %s2172, 1

</llo_original>
